<compile_context>
chip_gen: v6e
topology: v6e:2x2x1
jax: 0.10.0
libtpu: 0.0.40
codegen_flags: <defaults>
</compile_context>

<pallas_src>
import jax
import jax.numpy as jnp
from jax import lax
from jax.experimental import pallas as pl
from jax.experimental.pallas import tpu as pltpu

EPS = 1e-5

# float32 keeps the <=1e-3 match vs the f32 reference; flip to jnp.bfloat16 on
# v6e/v7x for ~2x MXU throughput and half the VMEM footprint (BN math and the
# accumulation stay f32 either way) -- relax the tolerance accordingly.
MXU_DTYPE = jnp.float32


def _pick_hw_tile(hw, ch_sum, budget_bytes=12 << 20):
    """Spatial tile for kernel 1: largest multiple-of-128 divisor of hw whose
    double-buffered f32 footprint (2 * 4B * ch_sum * tile) fits the budget
    (conservative enough for v7x's 64 MiB physical VMEM).  Falls back to hw
    itself when hw is not 128-aligned (block == full dim is always legal)."""
    if hw % 128 != 0:
        return hw
    max_tile = max(128, budget_bytes // (2 * 4 * max(ch_sum, 1)))
    best = 128
    for d in range(128, hw + 1, 128):
        if hw % d == 0 and d <= max_tile:
            best = d
    return best


# ---------------------------------------------------------------------------
# Kernel 1: fused BN1 (folded scale/bias) + ReLU + 1x1 conv, NCHW layout,
#           plus merged per-tile BN2 statistics (sum / sum-of-squares).
#   x_ref: (1, C, THW)   scale/bias: (C, 1)   w_ref: (Cm, C)
#   y_ref: (1, Cm, THW)  (lane-dense: THW % 128 == 0 or THW == H*W)
#   stat_ref: (1, 1, Cm, 2)
# ---------------------------------------------------------------------------
def bn_relu_conv1x1_kernel(x_ref, scale_ref, bias_ref, w_ref, y_ref, stat_ref):
    a = jnp.maximum(x_ref[0] * scale_ref[...] + bias_ref[...], 0.0)       # (C, THW)
    y = jnp.dot(w_ref[...].astype(MXU_DTYPE), a.astype(MXU_DTYPE),
                preferred_element_type=jnp.float32)                       # (Cm, THW)
    y_ref[0] = y
    # Merged BN2 partial statistics -> one tiny store per step; finished with
    # a small XLA reduction in the wrapper (no second HBM pass over y).
    s = jnp.sum(y, axis=1, keepdims=True)                                 # (Cm, 1)
    q = jnp.sum(y * y, axis=1, keepdims=True)                             # (Cm, 1)
    stat_ref[...] = jnp.concatenate([s, q], axis=1).reshape(1, 1, -1, 2)


# ---------------------------------------------------------------------------
# Kernel 2: fused BN2 + ReLU + 3x3 conv (padding=1) + channel concat, NCHW.
# Per grid step (one image):
#   x_ref: (1, C, H*W), y_ref: (1, Cm, H*W), scale/bias: (Cm, 1),
#   w_ref: (9, G, Cm)  ->  o_ref: (1, C+G, H*W)
# The conv is 9 accumulated MXU matmuls on statically shifted slices of a
# zero-extended activation (no im2col strip, no padded scratch, no rolls).
# ---------------------------------------------------------------------------
def _make_bn_relu_conv3x3_concat_kernel(H, W):
    HW = H * W

    def kernel(x_ref, y_ref, scale_ref, bias_ref, w_ref, o_ref):
        Cm = y_ref.shape[1]
        G = w_ref.shape[1]

        # BN2 + ReLU (Conv2d pads after BN/ReLU, so the *activation* is padded).
        z = jnp.maximum(y_ref[0] * scale_ref[...] + bias_ref[...], 0.0)   # (Cm, HW)

        # Zero-extend by one image row (+1) on each side of the flattened
        # spatial axis; a tap shift of d = dh*W + dw is then a static slice,
        # and the top/bottom image boundary is handled by the zeros.
        zero = jnp.zeros((Cm, W + 1), jnp.float32)
        zext = jnp.concatenate([zero, z, zero], axis=1).astype(MXU_DTYPE)
        base = W + 1

        # Column-validity masks (only dw needs masking); applied post-matmul
        # on (G, HW), i.e. G rows instead of Cm rows.
        col = lax.broadcasted_iota(jnp.int32, (1, HW), 1) % W
        lmask = (col >= 1).astype(jnp.float32)        # dw = -1
        rmask = (col <= W - 2).astype(jnp.float32)    # dw = +1

        acc = jnp.zeros((G, HW), jnp.float32)
        k = 0
        for dh in (-1, 0, 1):
            for dw in (-1, 0, 1):
                d = dh * W + dw
                zk = zext[:, base + d:base + d + HW]                      # (Cm, HW)
                t = jnp.dot(w_ref[k].astype(MXU_DTYPE), zk,
                            preferred_element_type=jnp.float32)           # (G, HW)
                if dw == -1:
                    t = t * lmask
                elif dw == 1:
                    t = t * rmask
                acc = acc + t
                k += 1

        # Fused channel concat [x | conv]: one full lane-dense block store.
        o_ref[0] = jnp.concatenate([x_ref[0], acc], axis=0).astype(o_ref.dtype)

    return kernel


# ---------------------------------------------------------------------------
# Wrapper: BN1 batch stats (inherent extra pass), kernel calls, free reshapes.
# ---------------------------------------------------------------------------
def bottleneck_forward(x_nchw, g1, b1, w1_oihw, g2, b2, w2_oihw):
    N, C, H, W = x_nchw.shape
    Cm = w1_oihw.shape[0]          # interChannels = 4 * growthRate
    G = w2_oihw.shape[0]           # growthRate
    HW = H * W

    # NCHW is kept throughout; the reshapes below are contiguous views, so the
    # NCHW<->NHWC transpose HBM passes of the previous version are gone.
    x = x_nchw.astype(jnp.float32).reshape(N, C, HW)

    # ---- BN1 batch statistics (training-mode BatchNorm2d), folded scale/bias.
    # Inherently a separate full pass over x (needed before kernel 1 can run);
    # one small XLA reduction, no layout change.
    mean1 = jnp.mean(x, axis=(0, 2))
    var1 = jnp.mean(jnp.square(x - mean1.reshape(1, C, 1)), axis=(0, 2))
    inv1 = g1 / jnp.sqrt(var1 + EPS)
    scale1 = inv1.reshape(C, 1)
    bias1 = (b1 - mean1 * inv1).reshape(C, 1)

    w1 = w1_oihw[:, :, 0, 0]                       # (Cm, C)

    THW = _pick_hw_tile(HW, C + Cm)
    nhw = HW // THW

    y, stats = pl.pallas_call(
        bn_relu_conv1x1_kernel,
        out_shape=(jax.ShapeDtypeStruct((N, Cm, HW), jnp.float32),
                   jax.ShapeDtypeStruct((N, nhw, Cm, 2), jnp.float32)),
        grid=(N, nhw),
        in_specs=[
            pl.BlockSpec((1, C, THW), lambda n, t: (n, 0, t)),
            pl.BlockSpec((C, 1), lambda n, t: (0, 0)),
            pl.BlockSpec((C, 1), lambda n, t: (0, 0)),
            pl.BlockSpec((Cm, C), lambda n, t: (0, 0)),
        ],
        out_specs=(
            pl.BlockSpec((1, Cm, THW), lambda n, t: (n, 0, t)),
            pl.BlockSpec((1, 1, Cm, 2), lambda n, t: (n, t, 0, 0)),
        ),
        compiler_params=pltpu.CompilerParams(
            dimension_semantics=("parallel", "parallel")),
    )(x, scale1, bias1, w1)

    # ---- Finish BN2 batch statistics from the fused per-tile partials.
    # NOTE: single-pass E[y^2]-E[y]^2 in f32 (clamp guards tiny cancellation);
    # fine at these sizes, use a shifted accumulation for very large M.
    m_cnt = N * HW
    sum2 = jnp.sum(stats[..., 0], axis=(0, 1))
    ssq2 = jnp.sum(stats[..., 1], axis=(0, 1))
    mean2 = sum2 / m_cnt
    var2 = jnp.maximum(ssq2 / m_cnt - mean2 * mean2, 0.0)   # biased, BN train
    inv2 = g2 / jnp.sqrt(var2 + EPS)
    scale2 = inv2.reshape(Cm, 1)
    bias2 = (b2 - mean2 * inv2).reshape(Cm, 1)

    # Tap-major weights: OIHW -> (kh, kw, O, I) -> (9, G, Cm), matching the
    # in-kernel (dh outer, dw inner) tap order.
    w2_taps = jnp.transpose(w2_oihw, (2, 3, 0, 1)).reshape(9, G, Cm)

    # TODO(synk): for real DenseNet sizes on v7x (64 MiB VMEM) add an H-tile
    # grid axis with a 1-row halo here instead of one full image per step.
    out = pl.pallas_call(
        _make_bn_relu_conv3x3_concat_kernel(H, W),
        out_shape=jax.ShapeDtypeStruct((N, C + G, HW), jnp.float32),
        grid=(N,),
        in_specs=[
            pl.BlockSpec((1, C, HW), lambda n: (n, 0, 0)),
            pl.BlockSpec((1, Cm, HW), lambda n: (n, 0, 0)),
            pl.BlockSpec((Cm, 1), lambda n: (0, 0)),
            pl.BlockSpec((Cm, 1), lambda n: (0, 0)),
            pl.BlockSpec((9, G, Cm), lambda n: (0, 0, 0)),
        ],
        out_specs=pl.BlockSpec((1, C + G, HW), lambda n: (n, 0, 0)),
        compiler_params=pltpu.CompilerParams(
            dimension_semantics=("parallel",)),
    )(x, y, scale2, bias2, w2_taps)

    # Free view back to the NCHW API shape (H*W stays contiguous).
    return out.reshape(N, C + G, H, W)


# ---------------------------------------------------------------------------
# Pure-JAX reference (mirrors the PyTorch forward in NCHW, training-mode BN).
# ---------------------------------------------------------------------------
def reference_forward(x, g1, b1, w1, g2, b2, w2):
    def bn_relu(v, g, b):
        m = jnp.mean(v, axis=(0, 2, 3), keepdims=True)
        s = jnp.mean((v - m) ** 2, axis=(0, 2, 3), keepdims=True)
        vn = (v - m) / jnp.sqrt(s + EPS) * g.reshape(1, -1, 1, 1) \
            + b.reshape(1, -1, 1, 1)
        return jnp.maximum(vn, 0.0)

    a = bn_relu(x, g1, b1)
    y = lax.conv_general_dilated(a, w1, (1, 1), 'VALID',
                                 dimension_numbers=('NCHW', 'OIHW', 'NCHW'))
    z = bn_relu(y, g2, b2)
    o = lax.conv_general_dilated(z, w2, (1, 1), ((1, 1), (1, 1)),
                                 dimension_numbers=('NCHW', 'OIHW', 'NCHW'))
    return jnp.concatenate([x, o], axis=1)


if __name__ == "__main__":
    # Small shapes consistent with the module: nChannels=4, growthRate=4.
    N, C, H, W = 2, 4, 16, 16
    growth = 4
    Cm = 4 * growth

    key = jax.random.PRNGKey(0)
    kx, k1, k2, k3, k4, k5, k6 = jax.random.split(key, 7)

    x = jax.random.normal(kx, (N, C, H, W), jnp.float32)
    # conv1: (interChannels, nChannels, 1, 1), conv2: (growthRate, interChannels, 3, 3)
    w1 = 0.3 * jax.random.normal(k1, (Cm, C, 1, 1), jnp.float32)
    w2 = 0.1 * jax.random.normal(k2, (growth, Cm, 3, 3), jnp.float32)
    g1 = 1.0 + 0.1 * jax.random.normal(k3, (C,), jnp.float32)
    b1 = 0.1 * jax.random.normal(k4, (C,), jnp.float32)
    g2 = 1.0 + 0.1 * jax.random.normal(k5, (Cm,), jnp.float32)
    b2 = 0.1 * jax.random.normal(k6, (Cm,), jnp.float32)

    fwd = jax.jit(bottleneck_forward)
    out = jax.block_until_ready(fwd(x, g1, b1, w1, g2, b2, w2))
    ref = jax.block_until_ready(reference_forward(x, g1, b1, w1, g2, b2, w2))

    assert out.shape == (N, C + growth, H, W), out.shape
    assert out.dtype == jnp.float32
    err = float(jnp.max(jnp.abs(out - ref)))
    if err > 1e-3:
        raise AssertionError(f"Pallas output mismatch vs reference, max err={err}")
    print("KERNEL_OK")
</pallas_src>

<mosaic_0001>
module attributes {stable_mosaic.version = 11 : i64} {
  func.func @bn_relu_conv1x1_kernel(%arg0: i32, %arg1: i32, %arg2: memref<1x4x256xf32, #tpu.memory_space<vmem>>, %arg3: memref<4x1xf32, #tpu.memory_space<vmem>>, %arg4: memref<4x1xf32, #tpu.memory_space<vmem>>, %arg5: memref<16x4xf32, #tpu.memory_space<vmem>>, %arg6: memref<1x16x256xf32, #tpu.memory_space<vmem>>, %arg7: memref<1x1x16x2xf32, #tpu.memory_space<vmem>>) attributes {dimension_semantics = [#tpu.dimension_semantics<parallel>, #tpu.dimension_semantics<parallel>], iteration_bounds = array<i64: 2, 1>, scalar_prefetch = 0 : i64, scratch_operands = 0 : i64, tpu.core_type = #tpu.core_type<tc>, window_params = [{transform_indices = @transform_0, window_bounds = array<i64: 1, 4, 256>}, {pipeline_mode = #tpu.pipeline_mode<synchronous>, transform_indices = @transform_1, window_bounds = array<i64: 4, 1>}, {pipeline_mode = #tpu.pipeline_mode<synchronous>, transform_indices = @transform_2, window_bounds = array<i64: 4, 1>}, {pipeline_mode = #tpu.pipeline_mode<synchronous>, transform_indices = @transform_3, window_bounds = array<i64: 16, 4>}, {transform_indices = @transform_4, window_bounds = array<i64: 1, 16, 256>}, {transform_indices = @transform_5, window_bounds = array<i64: 1, 1, 16, 2>}]} {
    %c0 = arith.constant 0 : index
    %c0_0 = arith.constant 0 : index
    %c0_1 = arith.constant 0 : index
    %0 = vector.load %arg2[%c0, %c0_0, %c0_1] : memref<1x4x256xf32, #tpu.memory_space<vmem>>, vector<1x4x256xf32>
    %1 = vector.shape_cast %0 : vector<1x4x256xf32> to vector<4x256xf32>
    %c0_2 = arith.constant 0 : index
    %c0_3 = arith.constant 0 : index
    %2 = vector.load %arg3[%c0_2, %c0_3] : memref<4x1xf32, #tpu.memory_space<vmem>>, vector<4x1xf32>
    %3 = vector.broadcast %2 : vector<4x1xf32> to vector<4x256xf32>
    %4 = arith.mulf %1, %3 : vector<4x256xf32>
    %c0_4 = arith.constant 0 : index
    %c0_5 = arith.constant 0 : index
    %5 = vector.load %arg4[%c0_4, %c0_5] : memref<4x1xf32, #tpu.memory_space<vmem>>, vector<4x1xf32>
    %6 = vector.broadcast %5 : vector<4x1xf32> to vector<4x256xf32>
    %7 = arith.addf %4, %6 : vector<4x256xf32>
    %cst = arith.constant 0.000000e+00 : f32
    %8 = vector.broadcast %cst : f32 to vector<4x256xf32>
    %9 = arith.maximumf %7, %8 : vector<4x256xf32>
    %c0_6 = arith.constant 0 : index
    %c0_7 = arith.constant 0 : index
    %10 = vector.load %arg5[%c0_6, %c0_7] : memref<16x4xf32, #tpu.memory_space<vmem>>, vector<16x4xf32>
    %cst_8 = arith.constant dense<0.000000e+00> : vector<16x256xf32>
    %11 = tpu.matmul %10, %9, %cst_8 {dimension_numbers = #tpu.dot_dimension_numbers<[1], [0], [0], [1], [0, 0, 1, 1], [], []>} : vector<16x4xf32>, vector<4x256xf32>, vector<16x256xf32> -> vector<16x256xf32>
    %c0_9 = arith.constant 0 : index
    %c0_10 = arith.constant 0 : index
    %c0_11 = arith.constant 0 : index
    %12 = vector.load %arg6[%c0_9, %c0_10, %c0_11] : memref<1x16x256xf32, #tpu.memory_space<vmem>>, vector<1x16x256xf32>
    %13 = vector.shape_cast %12 : vector<1x16x256xf32> to vector<16x256xf32>
    %14 = vector.shape_cast %11 : vector<16x256xf32> to vector<1x16x256xf32>
    tpu.vector_store %arg6[%c0_9, %c0_10, %c0_11], %14 {strides = array<i32>} : memref<1x16x256xf32, #tpu.memory_space<vmem>>, vector<1x16x256xf32>,
    %cst_12 = arith.constant dense<0.000000e+00> : vector<16xf32>
    %15 = vector.multi_reduction <add>, %11, %cst_12 [1] : vector<16x256xf32> to vector<16xf32>
    %16 = vector.shape_cast %15 : vector<16xf32> to vector<16x1xf32>
    %17 = arith.mulf %11, %11 : vector<16x256xf32>
    %cst_13 = arith.constant dense<0.000000e+00> : vector<16xf32>
    %18 = vector.multi_reduction <add>, %17, %cst_13 [1] : vector<16x256xf32> to vector<16xf32>
    %19 = vector.shape_cast %18 : vector<16xf32> to vector<16x1xf32>
    %20 = tpu.concatenate %16, %19 in 1 : vector<16x1xf32>, vector<16x1xf32> -> vector<16x2xf32>
    %21 = vector.shape_cast %20 : vector<16x2xf32> to vector<1x1x16x2xf32>
    %c0_14 = arith.constant 0 : index
    %c0_15 = arith.constant 0 : index
    %c0_16 = arith.constant 0 : index
    %c0_17 = arith.constant 0 : index
    %22 = vector.load %arg7[%c0_14, %c0_15, %c0_16, %c0_17] : memref<1x1x16x2xf32, #tpu.memory_space<vmem>>, vector<1x1x16x2xf32>
    tpu.vector_store %arg7[%c0_14, %c0_15, %c0_16, %c0_17], %21 {strides = array<i32>} : memref<1x1x16x2xf32, #tpu.memory_space<vmem>>, vector<1x1x16x2xf32>,
    return
  }
  func.func @transform_0(%arg0: i32, %arg1: i32) -> (i32, i32, i32) {
    %c0_i32 = arith.constant 0 : i32
    %c0_i32_0 = arith.constant 0 : i32
    return %arg0, %c0_i32, %arg1 : i32, i32, i32
  }
  func.func @transform_1(%arg0: i32, %arg1: i32) -> (i32, i32) {
    %c0_i32 = arith.constant 0 : i32
    %c0_i32_0 = arith.constant 0 : i32
    %c0_i32_1 = arith.constant 0 : i32
    return %c0_i32, %c0_i32_0 : i32, i32
  }
  func.func @transform_2(%arg0: i32, %arg1: i32) -> (i32, i32) {
    %c0_i32 = arith.constant 0 : i32
    %c0_i32_0 = arith.constant 0 : i32
    %c0_i32_1 = arith.constant 0 : i32
    return %c0_i32, %c0_i32_0 : i32, i32
  }
  func.func @transform_3(%arg0: i32, %arg1: i32) -> (i32, i32) {
    %c0_i32 = arith.constant 0 : i32
    %c0_i32_0 = arith.constant 0 : i32
    %c0_i32_1 = arith.constant 0 : i32
    return %c0_i32, %c0_i32_0 : i32, i32
  }
  func.func @transform_4(%arg0: i32, %arg1: i32) -> (i32, i32, i32) {
    %c0_i32 = arith.constant 0 : i32
    %c0_i32_0 = arith.constant 0 : i32
    return %arg0, %c0_i32, %arg1 : i32, i32, i32
  }
  func.func @transform_5(%arg0: i32, %arg1: i32) -> (i32, i32, i32, i32) {
    %c0_i32 = arith.constant 0 : i32
    %c0_i32_0 = arith.constant 0 : i32
    %c0_i32_1 = arith.constant 0 : i32
    return %arg0, %arg1, %c0_i32, %c0_i32_0 : i32, i32, i32, i32
  }
}

module attributes {stable_mosaic.version = 11 : i64} {
  func.func @kernel(%arg0: i32, %arg1: memref<1x4x256xf32, #tpu.memory_space<vmem>>, %arg2: memref<1x16x256xf32, #tpu.memory_space<vmem>>, %arg3: memref<16x1xf32, #tpu.memory_space<vmem>>, %arg4: memref<16x1xf32, #tpu.memory_space<vmem>>, %arg5: memref<9x4x16xf32, #tpu.memory_space<vmem>>, %arg6: memref<1x8x256xf32, #tpu.memory_space<vmem>>) attributes {dimension_semantics = [#tpu.dimension_semantics<parallel>], iteration_bounds = array<i64: 2>, scalar_prefetch = 0 : i64, scratch_operands = 0 : i64, tpu.core_type = #tpu.core_type<tc>, window_params = [{transform_indices = @transform_0, window_bounds = array<i64: 1, 4, 256>}, {transform_indices = @transform_1, window_bounds = array<i64: 1, 16, 256>}, {pipeline_mode = #tpu.pipeline_mode<synchronous>, transform_indices = @transform_2, window_bounds = array<i64: 16, 1>}, {pipeline_mode = #tpu.pipeline_mode<synchronous>, transform_indices = @transform_3, window_bounds = array<i64: 16, 1>}, {pipeline_mode = #tpu.pipeline_mode<synchronous>, transform_indices = @transform_4, window_bounds = array<i64: 9, 4, 16>}, {transform_indices = @transform_5, window_bounds = array<i64: 1, 8, 256>}]} {
    %c0 = arith.constant 0 : index
    %c0_0 = arith.constant 0 : index
    %c0_1 = arith.constant 0 : index
    %0 = vector.load %arg2[%c0, %c0_0, %c0_1] : memref<1x16x256xf32, #tpu.memory_space<vmem>>, vector<1x16x256xf32>
    %1 = vector.shape_cast %0 : vector<1x16x256xf32> to vector<16x256xf32>
    %c0_2 = arith.constant 0 : index
    %c0_3 = arith.constant 0 : index
    %2 = vector.load %arg3[%c0_2, %c0_3] : memref<16x1xf32, #tpu.memory_space<vmem>>, vector<16x1xf32>
    %3 = vector.broadcast %2 : vector<16x1xf32> to vector<16x256xf32>
    %4 = arith.mulf %1, %3 : vector<16x256xf32>
    %c0_4 = arith.constant 0 : index
    %c0_5 = arith.constant 0 : index
    %5 = vector.load %arg4[%c0_4, %c0_5] : memref<16x1xf32, #tpu.memory_space<vmem>>, vector<16x1xf32>
    %6 = vector.broadcast %5 : vector<16x1xf32> to vector<16x256xf32>
    %7 = arith.addf %4, %6 : vector<16x256xf32>
    %cst = arith.constant 0.000000e+00 : f32
    %8 = vector.broadcast %cst : f32 to vector<16x256xf32>
    %9 = arith.maximumf %7, %8 : vector<16x256xf32>
    %cst_6 = arith.constant 0.000000e+00 : f32
    %10 = vector.broadcast %cst_6 : f32 to vector<16x17xf32>
    %11 = tpu.concatenate %10, %9, %10 in 1 : vector<16x17xf32>, vector<16x256xf32>, vector<16x17xf32> -> vector<16x290xf32>
    %12 = tpu.iota {dimensions = array<i32: 1>} : vector<1x256xi32>
    %c16_i32 = arith.constant 16 : i32
    %c0_i32 = arith.constant 0 : i32
    %13 = arith.cmpi eq, %c16_i32, %c0_i32 : i32
    %c1_i32 = arith.constant 1 : i32
    %14 = arith.select %13, %c1_i32, %c16_i32 : i32
    %15 = vector.broadcast %14 : i32 to vector<1x256xi32>
    %16 = arith.remsi %12, %15 : vector<1x256xi32>
    %c0_i32_7 = arith.constant 0 : i32
    %17 = vector.broadcast %c0_i32_7 : i32 to vector<1x256xi32>
    %18 = arith.cmpi ne, %16, %17 : vector<1x256xi32>
    %c0_i32_8 = arith.constant 0 : i32
    %19 = vector.broadcast %c0_i32_8 : i32 to vector<1x256xi32>
    %20 = arith.cmpi slt, %16, %19 : vector<1x256xi32>
    %c0_i32_9 = arith.constant 0 : i32
    %21 = arith.cmpi slt, %14, %c0_i32_9 : i32
    %22 = vector.broadcast %21 : i1 to vector<1x256xi1>
    %23 = vector.broadcast %22 : vector<1x256xi1> to vector<1x256xi1>
    %24 = arith.xori %20, %23 : vector<1x256xi1>
    %25 = arith.andi %24, %18 : vector<1x256xi1>
    %26 = vector.broadcast %14 : i32 to vector<1x256xi32>
    %27 = arith.addi %16, %26 : vector<1x256xi32>
    %28 = arith.select %25, %27, %16 : vector<1x256xi1>, vector<1x256xi32>
    %c1_i32_10 = arith.constant 1 : i32
    %29 = vector.broadcast %c1_i32_10 : i32 to vector<1x256xi32>
    %30 = arith.cmpi sge, %28, %29 : vector<1x256xi32>
    %31 = arith.extui %30 : vector<1x256xi1> to vector<1x256xi32>
    %32 = arith.sitofp %31 : vector<1x256xi32> to vector<1x256xf32>
    %c14_i32 = arith.constant 14 : i32
    %33 = vector.broadcast %c14_i32 : i32 to vector<1x256xi32>
    %34 = arith.cmpi sle, %28, %33 : vector<1x256xi32>
    %35 = arith.extui %34 : vector<1x256xi1> to vector<1x256xi32>
    %36 = arith.sitofp %35 : vector<1x256xi32> to vector<1x256xf32>
    %cst_11 = arith.constant 0.000000e+00 : f32
    %37 = vector.broadcast %cst_11 : f32 to vector<4x256xf32>
    %38 = vector.extract_strided_slice %11 {offsets = [0, 0], sizes = [16, 256], strides = [1, 1]} : vector<16x290xf32> to vector<16x256xf32>
    %c0_12 = arith.constant 0 : index
    %c0_13 = arith.constant 0 : index
    %c0_14 = arith.constant 0 : index
    %39 = vector.load %arg5[%c0_12, %c0_13, %c0_14] : memref<9x4x16xf32, #tpu.memory_space<vmem>>, vector<1x4x16xf32>
    %40 = vector.shape_cast %39 : vector<1x4x16xf32> to vector<4x16xf32>
    %cst_15 = arith.constant dense<0.000000e+00> : vector<4x256xf32>
    %41 = tpu.matmul %40, %38, %cst_15 {dimension_numbers = #tpu.dot_dimension_numbers<[1], [0], [0], [1], [0, 0, 1, 1], [], []>} : vector<4x16xf32>, vector<16x256xf32>, vector<4x256xf32> -> vector<4x256xf32>
    %42 = vector.broadcast %32 : vector<1x256xf32> to vector<4x256xf32>
    %43 = arith.mulf %41, %42 : vector<4x256xf32>
    %44 = arith.addf %37, %43 : vector<4x256xf32>
    %45 = vector.extract_strided_slice %11 {offsets = [0, 1], sizes = [16, 256], strides = [1, 1]} : vector<16x290xf32> to vector<16x256xf32>
    %c1 = arith.constant 1 : index
    %c0_16 = arith.constant 0 : index
    %c0_17 = arith.constant 0 : index
    %46 = vector.load %arg5[%c1, %c0_16, %c0_17] : memref<9x4x16xf32, #tpu.memory_space<vmem>>, vector<1x4x16xf32>
    %47 = vector.shape_cast %46 : vector<1x4x16xf32> to vector<4x16xf32>
    %cst_18 = arith.constant dense<0.000000e+00> : vector<4x256xf32>
    %48 = tpu.matmul %47, %45, %cst_18 {dimension_numbers = #tpu.dot_dimension_numbers<[1], [0], [0], [1], [0, 0, 1, 1], [], []>} : vector<4x16xf32>, vector<16x256xf32>, vector<4x256xf32> -> vector<4x256xf32>
    %49 = arith.addf %44, %48 : vector<4x256xf32>
    %50 = vector.extract_strided_slice %11 {offsets = [0, 2], sizes = [16, 256], strides = [1, 1]} : vector<16x290xf32> to vector<16x256xf32>
    %c2 = arith.constant 2 : index
    %c0_19 = arith.constant 0 : index
    %c0_20 = arith.constant 0 : index
    %51 = vector.load %arg5[%c2, %c0_19, %c0_20] : memref<9x4x16xf32, #tpu.memory_space<vmem>>, vector<1x4x16xf32>
    %52 = vector.shape_cast %51 : vector<1x4x16xf32> to vector<4x16xf32>
    %cst_21 = arith.constant dense<0.000000e+00> : vector<4x256xf32>
    %53 = tpu.matmul %52, %50, %cst_21 {dimension_numbers = #tpu.dot_dimension_numbers<[1], [0], [0], [1], [0, 0, 1, 1], [], []>} : vector<4x16xf32>, vector<16x256xf32>, vector<4x256xf32> -> vector<4x256xf32>
    %54 = vector.broadcast %36 : vector<1x256xf32> to vector<4x256xf32>
    %55 = arith.mulf %53, %54 : vector<4x256xf32>
    %56 = arith.addf %49, %55 : vector<4x256xf32>
    %57 = vector.extract_strided_slice %11 {offsets = [0, 16], sizes = [16, 256], strides = [1, 1]} : vector<16x290xf32> to vector<16x256xf32>
    %c3 = arith.constant 3 : index
    %c0_22 = arith.constant 0 : index
    %c0_23 = arith.constant 0 : index
    %58 = vector.load %arg5[%c3, %c0_22, %c0_23] : memref<9x4x16xf32, #tpu.memory_space<vmem>>, vector<1x4x16xf32>
    %59 = vector.shape_cast %58 : vector<1x4x16xf32> to vector<4x16xf32>
    %cst_24 = arith.constant dense<0.000000e+00> : vector<4x256xf32>
    %60 = tpu.matmul %59, %57, %cst_24 {dimension_numbers = #tpu.dot_dimension_numbers<[1], [0], [0], [1], [0, 0, 1, 1], [], []>} : vector<4x16xf32>, vector<16x256xf32>, vector<4x256xf32> -> vector<4x256xf32>
    %61 = vector.broadcast %32 : vector<1x256xf32> to vector<4x256xf32>
    %62 = arith.mulf %60, %61 : vector<4x256xf32>
    %63 = arith.addf %56, %62 : vector<4x256xf32>
    %64 = vector.extract_strided_slice %11 {offsets = [0, 17], sizes = [16, 256], strides = [1, 1]} : vector<16x290xf32> to vector<16x256xf32>
    %c4 = arith.constant 4 : index
    %c0_25 = arith.constant 0 : index
    %c0_26 = arith.constant 0 : index
    %65 = vector.load %arg5[%c4, %c0_25, %c0_26] : memref<9x4x16xf32, #tpu.memory_space<vmem>>, vector<1x4x16xf32>
    %66 = vector.shape_cast %65 : vector<1x4x16xf32> to vector<4x16xf32>
    %cst_27 = arith.constant dense<0.000000e+00> : vector<4x256xf32>
    %67 = tpu.matmul %66, %64, %cst_27 {dimension_numbers = #tpu.dot_dimension_numbers<[1], [0], [0], [1], [0, 0, 1, 1], [], []>} : vector<4x16xf32>, vector<16x256xf32>, vector<4x256xf32> -> vector<4x256xf32>
    %68 = arith.addf %63, %67 : vector<4x256xf32>
    %69 = vector.extract_strided_slice %11 {offsets = [0, 18], sizes = [16, 256], strides = [1, 1]} : vector<16x290xf32> to vector<16x256xf32>
    %c5 = arith.constant 5 : index
    %c0_28 = arith.constant 0 : index
    %c0_29 = arith.constant 0 : index
    %70 = vector.load %arg5[%c5, %c0_28, %c0_29] : memref<9x4x16xf32, #tpu.memory_space<vmem>>, vector<1x4x16xf32>
    %71 = vector.shape_cast %70 : vector<1x4x16xf32> to vector<4x16xf32>
    %cst_30 = arith.constant dense<0.000000e+00> : vector<4x256xf32>
    %72 = tpu.matmul %71, %69, %cst_30 {dimension_numbers = #tpu.dot_dimension_numbers<[1], [0], [0], [1], [0, 0, 1, 1], [], []>} : vector<4x16xf32>, vector<16x256xf32>, vector<4x256xf32> -> vector<4x256xf32>
    %73 = vector.broadcast %36 : vector<1x256xf32> to vector<4x256xf32>
    %74 = arith.mulf %72, %73 : vector<4x256xf32>
    %75 = arith.addf %68, %74 : vector<4x256xf32>
    %76 = vector.extract_strided_slice %11 {offsets = [0, 32], sizes = [16, 256], strides = [1, 1]} : vector<16x290xf32> to vector<16x256xf32>
    %c6 = arith.constant 6 : index
    %c0_31 = arith.constant 0 : index
    %c0_32 = arith.constant 0 : index
    %77 = vector.load %arg5[%c6, %c0_31, %c0_32] : memref<9x4x16xf32, #tpu.memory_space<vmem>>, vector<1x4x16xf32>
    %78 = vector.shape_cast %77 : vector<1x4x16xf32> to vector<4x16xf32>
    %cst_33 = arith.constant dense<0.000000e+00> : vector<4x256xf32>
    %79 = tpu.matmul %78, %76, %cst_33 {dimension_numbers = #tpu.dot_dimension_numbers<[1], [0], [0], [1], [0, 0, 1, 1], [], []>} : vector<4x16xf32>, vector<16x256xf32>, vector<4x256xf32> -> vector<4x256xf32>
    %80 = vector.broadcast %32 : vector<1x256xf32> to vector<4x256xf32>
    %81 = arith.mulf %79, %80 : vector<4x256xf32>
    %82 = arith.addf %75, %81 : vector<4x256xf32>
    %83 = vector.extract_strided_slice %11 {offsets = [0, 33], sizes = [16, 256], strides = [1, 1]} : vector<16x290xf32> to vector<16x256xf32>
    %c7 = arith.constant 7 : index
    %c0_34 = arith.constant 0 : index
    %c0_35 = arith.constant 0 : index
    %84 = vector.load %arg5[%c7, %c0_34, %c0_35] : memref<9x4x16xf32, #tpu.memory_space<vmem>>, vector<1x4x16xf32>
    %85 = vector.shape_cast %84 : vector<1x4x16xf32> to vector<4x16xf32>
    %cst_36 = arith.constant dense<0.000000e+00> : vector<4x256xf32>
    %86 = tpu.matmul %85, %83, %cst_36 {dimension_numbers = #tpu.dot_dimension_numbers<[1], [0], [0], [1], [0, 0, 1, 1], [], []>} : vector<4x16xf32>, vector<16x256xf32>, vector<4x256xf32> -> vector<4x256xf32>
    %87 = arith.addf %82, %86 : vector<4x256xf32>
    %88 = vector.extract_strided_slice %11 {offsets = [0, 34], sizes = [16, 256], strides = [1, 1]} : vector<16x290xf32> to vector<16x256xf32>
    %c8 = arith.constant 8 : index
    %c0_37 = arith.constant 0 : index
    %c0_38 = arith.constant 0 : index
    %89 = vector.load %arg5[%c8, %c0_37, %c0_38] : memref<9x4x16xf32, #tpu.memory_space<vmem>>, vector<1x4x16xf32>
    %90 = vector.shape_cast %89 : vector<1x4x16xf32> to vector<4x16xf32>
    %cst_39 = arith.constant dense<0.000000e+00> : vector<4x256xf32>
    %91 = tpu.matmul %90, %88, %cst_39 {dimension_numbers = #tpu.dot_dimension_numbers<[1], [0], [0], [1], [0, 0, 1, 1], [], []>} : vector<4x16xf32>, vector<16x256xf32>, vector<4x256xf32> -> vector<4x256xf32>
    %92 = vector.broadcast %36 : vector<1x256xf32> to vector<4x256xf32>
    %93 = arith.mulf %91, %92 : vector<4x256xf32>
    %94 = arith.addf %87, %93 : vector<4x256xf32>
    %c0_40 = arith.constant 0 : index
    %c0_41 = arith.constant 0 : index
    %c0_42 = arith.constant 0 : index
    %95 = vector.load %arg1[%c0_40, %c0_41, %c0_42] : memref<1x4x256xf32, #tpu.memory_space<vmem>>, vector<1x4x256xf32>
    %96 = vector.shape_cast %95 : vector<1x4x256xf32> to vector<4x256xf32>
    %97 = tpu.concatenate %96, %94 in 0 : vector<4x256xf32>, vector<4x256xf32> -> vector<8x256xf32>
    %c0_43 = arith.constant 0 : index
    %c0_44 = arith.constant 0 : index
    %c0_45 = arith.constant 0 : index
    %98 = vector.load %arg6[%c0_43, %c0_44, %c0_45] : memref<1x8x256xf32, #tpu.memory_space<vmem>>, vector<1x8x256xf32>
    %99 = vector.shape_cast %98 : vector<1x8x256xf32> to vector<8x256xf32>
    %100 = vector.shape_cast %97 : vector<8x256xf32> to vector<1x8x256xf32>
    tpu.vector_store %arg6[%c0_43, %c0_44, %c0_45], %100 {strides = array<i32>} : memref<1x8x256xf32, #tpu.memory_space<vmem>>, vector<1x8x256xf32>,
    return
  }
  func.func @transform_0(%arg0: i32) -> (i32, i32, i32) {
    %c0_i32 = arith.constant 0 : i32
    %c0_i32_0 = arith.constant 0 : i32
    %c0_i32_1 = arith.constant 0 : i32
    return %arg0, %c0_i32, %c0_i32_0 : i32, i32, i32
  }
  func.func @transform_1(%arg0: i32) -> (i32, i32, i32) {
    %c0_i32 = arith.constant 0 : i32
    %c0_i32_0 = arith.constant 0 : i32
    %c0_i32_1 = arith.constant 0 : i32
    return %arg0, %c0_i32, %c0_i32_0 : i32, i32, i32
  }
  func.func @transform_2(%arg0: i32) -> (i32, i32) {
    %c0_i32 = arith.constant 0 : i32
    %c0_i32_0 = arith.constant 0 : i32
    %c0_i32_1 = arith.constant 0 : i32
    return %c0_i32, %c0_i32_0 : i32, i32
  }
  func.func @transform_3(%arg0: i32) -> (i32, i32) {
    %c0_i32 = arith.constant 0 : i32
    %c0_i32_0 = arith.constant 0 : i32
    %c0_i32_1 = arith.constant 0 : i32
    return %c0_i32, %c0_i32_0 : i32, i32
  }
  func.func @transform_4(%arg0: i32) -> (i32, i32, i32) {
    %c0_i32 = arith.constant 0 : i32
    %c0_i32_0 = arith.constant 0 : i32
    %c0_i32_1 = arith.constant 0 : i32
    %c0_i32_2 = arith.constant 0 : i32
    return %c0_i32, %c0_i32_0, %c0_i32_1 : i32, i32, i32
  }
  func.func @transform_5(%arg0: i32) -> (i32, i32, i32) {
    %c0_i32 = arith.constant 0 : i32
    %c0_i32_0 = arith.constant 0 : i32
    %c0_i32_1 = arith.constant 0 : i32
    return %arg0, %c0_i32, %c0_i32_0 : i32, i32, i32
  }
}

</mosaic_0001>

<llo_original>
// kernel: bottleneck_forward.2
$region0: #{bottleneck_forward.2}
  #allocation0 [shape = 'u32[]', space=smem, size = 0x4, offset = 0x4, fixed_abs, tag = 'smem constant byte address 0x4 - core index']
  #allocation1 [shape = 'u32[144,128]{1,0:T(1,128)}', space=vmem, size = 0x12000, scoped, tag = 'internal scratch']
  %s0 = inlined_call_operand.vmem [shape: f32[2,4,256], index: 0, kind: input, shape index: {}]
  %s1 = inlined_call_operand.vmem [shape: f32[4,1], index: 1, kind: input, shape index: {}]
  %s2 = inlined_call_operand.vmem [shape: f32[4,1], index: 2, kind: input, shape index: {}]
  %s3 = inlined_call_operand.vmem [shape: f32[16,4], index: 3, kind: input, shape index: {}]
  %s4 = inlined_call_operand.vmem [shape: f32[2,16,256], index: 4, kind: output, shape index: {0}]
  %s5 = inlined_call_operand.vmem [shape: f32[2,1,16,2], index: 5, kind: output, shape index: {1}]
  %6 = xla_tuple %s4, %s5
  %s7 = sld [smem:[#allocation0]]
  $region57: #{bottleneck_forward.2} parent=0
    _
  %s9 = ssub.s32 1, %s7
  %s10 = scalar_select 0, %s9, %s7
  loop: start=0, step=1, limit=4
  $region2: #{bottleneck_forward.2} parent=0 // loop_pre_header
    _
  $region3: #{bottleneck_forward.2} parent=0 // loop_header
    %s12 = sphi 0, %s16
    %p13 = scmp.ge.s32.totalorder %s12, 4
    %s19 = sphi 0, %s31
    %s20 = sphi 0, %s27
    %s21 = sphi 0, %s19
    %s22 = sphi 0, %s20
    %s23 = sphi 0, %s21
    %s24 = sphi 0, %s22
    %s36 = sphi 0, %s38
    %s39 = sphi 0, %s36
    %s40 = sphi 0, %s39
    %s56 = sphi 0, %s40
    %s60 = sphi 0, %s60
    %s62 = sphi 0, %s60
    %s63 = sphi 0, %s62
    %s77 = sphi 0, %s63
    %s81 = sphi 0, %s81
    %s83 = sphi 0, %s81
    %s84 = sphi 0, %s83
    %s98 = sphi 0, %s84
    %s102 = sphi 0, %s102
    %s104 = sphi 0, %s102
    %s105 = sphi 0, %s104
    %s119 = sphi 0, %s105
    %s127 = sphi 0, %s129
    %s130 = sphi 0, %s127
    %s131 = sphi 0, %s130
    %s147 = sphi 0, %s131
    %s155 = sphi 0, %s157
    %s158 = sphi 0, %s155
    %s159 = sphi 0, %s158
    %s175 = sphi 0, %s159
  $region4: #{bottleneck_forward.2} parent=0 // loop_header_branch
    %15 = sbr.rel (%p13) target = $region8
  $region5: #{bottleneck_forward.2} parent=0 // loop_body
    %s17 = ssub.s32 %s12, 1
    %s18 = ssub.s32 %s12, 2
    %s25 = sadd.s32 1, %s20
    %p26 = scmp.ge.s32.totalorder %s25, 1
    %s27 = scalar_select %p26, 0, %s25
    %s28 = sadd.s32 1, %s19
    %s29 = scalar_select %p26, %s28, %s19
    %p30 = scmp.ge.s32.totalorder %s29, 2
    %s31 = scalar_select %p30, 0, %s29
    %s32 = ssub.s32 %s19, %s31
    %s33 = ssub.s32 %s20, %s27
    %s34 = sor.u32 %s32, %s33
    %p35 = scmp.eq.s32.totalorder %s34, 0
    %s37 = sadd.s32 %s36, 1
    %s38 = scalar_select %p35, %s36, %s37
    %p41 = pneg %p35
    %p42 = scmp.eq.s32.totalorder %s12, 1
    %p43 = por %p41, %p42
    %p44 = scmp.ne.s32.totalorder %s36, %s39
    %p45 = scmp.eq.s32.totalorder %s12, 0
    %p46 = por %p44, %p45
    %p47 = scmp.ne.s32.totalorder %s36, %s39
    %p48 = scmp.eq.s32.totalorder %s17, 1
    %p49 = por %p47, %p48
    %p50 = scmp.ne.s32.totalorder %s39, %s40
    %p51 = scmp.eq.s32.totalorder %s17, 0
    %p52 = por %p50, %p51
    %p53 = scmp.ne.s32.totalorder %s39, %s40
    %p54 = scmp.eq.s32.totalorder %s18, 1
    %p55 = por %p53, %p54
    %p57 = scmp.ne.s32.totalorder %s40, %s56
    %p58 = scmp.eq.s32.totalorder %s18, 0
    %p59 = por %p57, %p58
    %s61 = sadd.s32 %s60, 1
    %p64 = scmp.eq.s32.totalorder %s12, 1
    %p65 = scmp.ne.s32.totalorder %s60, %s62
    %p66 = scmp.eq.s32.totalorder %s12, 0
    %p67 = por %p65, %p66
    %p68 = scmp.ne.s32.totalorder %s60, %s62
    %p69 = scmp.eq.s32.totalorder %s17, 1
    %p70 = por %p68, %p69
    %p71 = scmp.ne.s32.totalorder %s62, %s63
    %p72 = scmp.eq.s32.totalorder %s17, 0
    %p73 = por %p71, %p72
    %p74 = scmp.ne.s32.totalorder %s62, %s63
    %p75 = scmp.eq.s32.totalorder %s18, 1
    %p76 = por %p74, %p75
    %p78 = scmp.ne.s32.totalorder %s63, %s77
    %p79 = scmp.eq.s32.totalorder %s18, 0
    %p80 = por %p78, %p79
    %s82 = sadd.s32 %s81, 1
    %p85 = scmp.eq.s32.totalorder %s12, 1
    %p86 = scmp.ne.s32.totalorder %s81, %s83
    %p87 = scmp.eq.s32.totalorder %s12, 0
    %p88 = por %p86, %p87
    %p89 = scmp.ne.s32.totalorder %s81, %s83
    %p90 = scmp.eq.s32.totalorder %s17, 1
    %p91 = por %p89, %p90
    %p92 = scmp.ne.s32.totalorder %s83, %s84
    %p93 = scmp.eq.s32.totalorder %s17, 0
    %p94 = por %p92, %p93
    %p95 = scmp.ne.s32.totalorder %s83, %s84
    %p96 = scmp.eq.s32.totalorder %s18, 1
    %p97 = por %p95, %p96
    %p99 = scmp.ne.s32.totalorder %s84, %s98
    %p100 = scmp.eq.s32.totalorder %s18, 0
    %p101 = por %p99, %p100
    %s103 = sadd.s32 %s102, 1
    %p106 = scmp.eq.s32.totalorder %s12, 1
    %p107 = scmp.ne.s32.totalorder %s102, %s104
    %p108 = scmp.eq.s32.totalorder %s12, 0
    %p109 = por %p107, %p108
    %p110 = scmp.ne.s32.totalorder %s102, %s104
    %p111 = scmp.eq.s32.totalorder %s17, 1
    %p112 = por %p110, %p111
    %p113 = scmp.ne.s32.totalorder %s104, %s105
    %p114 = scmp.eq.s32.totalorder %s17, 0
    %p115 = por %p113, %p114
    %p116 = scmp.ne.s32.totalorder %s104, %s105
    %p117 = scmp.eq.s32.totalorder %s18, 1
    %p118 = por %p116, %p117
    %p120 = scmp.ne.s32.totalorder %s105, %s119
    %p121 = scmp.eq.s32.totalorder %s18, 0
    %p122 = por %p120, %p121
    %s123 = ssub.s32 %s19, %s31
    %s124 = ssub.s32 %s20, %s27
    %s125 = sor.u32 %s123, %s124
    %p126 = scmp.eq.s32.totalorder %s125, 0
    %s128 = sadd.s32 %s127, 1
    %s129 = scalar_select %p126, %s127, %s128
    %p132 = pneg %p126
    %p133 = scmp.eq.s32.totalorder %s12, 1
    %p134 = por %p132, %p133
    %p135 = scmp.ne.s32.totalorder %s127, %s130
    %p136 = scmp.eq.s32.totalorder %s12, 0
    %p137 = por %p135, %p136
    %p138 = scmp.ne.s32.totalorder %s127, %s130
    %p139 = scmp.eq.s32.totalorder %s17, 1
    %p140 = por %p138, %p139
    %p141 = scmp.ne.s32.totalorder %s130, %s131
    %p142 = scmp.eq.s32.totalorder %s17, 0
    %p143 = por %p141, %p142
    %p144 = scmp.ne.s32.totalorder %s130, %s131
    %p145 = scmp.eq.s32.totalorder %s18, 1
    %p146 = por %p144, %p145
    %p148 = scmp.ne.s32.totalorder %s131, %s147
    %p149 = scmp.eq.s32.totalorder %s18, 0
    %p150 = por %p148, %p149
    %s151 = ssub.s32 %s19, %s31
    %s152 = ssub.s32 %s20, %s27
    %s153 = sor.u32 %s151, %s152
    %p154 = scmp.eq.s32.totalorder %s153, 0
    %s156 = sadd.s32 %s155, 1
    %s157 = scalar_select %p154, %s155, %s156
    %p160 = pneg %p154
    %p161 = scmp.eq.s32.totalorder %s12, 1
    %p162 = por %p160, %p161
    %p163 = scmp.ne.s32.totalorder %s155, %s158
    %p164 = scmp.eq.s32.totalorder %s12, 0
    %p165 = por %p163, %p164
    %p166 = scmp.ne.s32.totalorder %s155, %s158
    %p167 = scmp.eq.s32.totalorder %s17, 1
    %p168 = por %p166, %p167
    %p169 = scmp.ne.s32.totalorder %s158, %s159
    %p170 = scmp.eq.s32.totalorder %s17, 0
    %p171 = por %p169, %p170
    %p172 = scmp.ne.s32.totalorder %s158, %s159
    %p173 = scmp.eq.s32.totalorder %s18, 1
    %p174 = por %p172, %p173
    %p176 = scmp.ne.s32.totalorder %s159, %s175
    %p177 = scmp.eq.s32.totalorder %s18, 0
    %p178 = por %p176, %p177
    %p179 = scmp.le.s32.totalorder 1, %s12
    %p180 = scmp.lt.s32.totalorder %s12, 3
    %p181 = pnand %p179, %p180
    %p182 = pneg %p181
    // Predicated region
    $region9: #{bottleneck_forward.2} parent=5 // pred_check
      _
    $region10: #{bottleneck_forward.2} parent=5 // pred_check_branch
      %184 = sbr.rel (%p181) target = $region12
    $region11: #{bottleneck_forward.2} parent=5 // pred_region
      %s185 = ssub.s32 %s12, 1
      // Predicated region
      $region13: #{bottleneck_forward.2} parent=11 // pred_check
        %p186 = pneg %p73
      $region14: #{bottleneck_forward.2} parent=11 // pred_check_branch
        %188 = sbr.rel (%p186) target = $region16
      $region15: #{bottleneck_forward.2} parent=11 // pred_region
        _
      $region16: #{bottleneck_forward.2} parent=11 // pred_fallthru
        _
      // Predicated region
      $region17: #{bottleneck_forward.2} parent=11 // pred_check
        %p189 = pneg %p94
      $region18: #{bottleneck_forward.2} parent=11 // pred_check_branch
        %191 = sbr.rel (%p189) target = $region20
      $region19: #{bottleneck_forward.2} parent=11 // pred_region
        _
      $region20: #{bottleneck_forward.2} parent=11 // pred_fallthru
        _
      // Predicated region
      $region21: #{bottleneck_forward.2} parent=11 // pred_check
        %p192 = pneg %p115
      $region22: #{bottleneck_forward.2} parent=11 // pred_check_branch
        %194 = sbr.rel (%p192) target = $region24
      $region23: #{bottleneck_forward.2} parent=11 // pred_region
        _
      $region24: #{bottleneck_forward.2} parent=11 // pred_fallthru
        _
    $region12: #{bottleneck_forward.2} parent=5 // pred_fallthru
      _
    %p195 = scmp.lt.s32.totalorder %s12, 2
    // Predicated region
    $region25: #{bottleneck_forward.2} parent=5 // pred_check
      %p196 = pneg %p195
    $region26: #{bottleneck_forward.2} parent=5 // pred_check_branch
      %198 = sbr.rel (%p196) target = $region28
    $region27: #{bottleneck_forward.2} parent=5 // pred_region
      // Predicated region
      $region29: #{bottleneck_forward.2} parent=27 // pred_check
        %p199 = pneg %p46
      $region30: #{bottleneck_forward.2} parent=27 // pred_check_branch
        %201 = sbr.rel (%p199) target = $region32
      $region31: #{bottleneck_forward.2} parent=27 // pred_region
        %s202 = smul.u32 2, %s20
        %p203 = scmp.lt.s32.totalorder %s19, 1
        %s204 = scalar_select %p203, %s19, 1
        %p205 = scmp.lt.s32.totalorder %s202, 1
        %s206 = scalar_select %p205, %s202, 1
        %s207 = smul.addr %s204, 2
        %s208 = sadd.s32 %s206, %s207
        %s209 = smul.addr %s208, 4
        %s210 = scalar_lea.vmem %s0, %s209
        %s211 = smul.u32 2, %s20
      $region32: #{bottleneck_forward.2} parent=27 // pred_fallthru
        _
    $region28: #{bottleneck_forward.2} parent=5 // pred_fallthru
      _
    %p212 = scmp.le.s32.totalorder 1, %s12
    %p213 = scmp.lt.s32.totalorder %s12, 3
    %p214 = pnand %p212, %p213
    %p215 = pneg %p214
    // Predicated region
    $region33: #{bottleneck_forward.2} parent=5 // pred_check
      _
    $region34: #{bottleneck_forward.2} parent=5 // pred_check_branch
      %217 = sbr.rel (%p214) target = $region36
    $region35: #{bottleneck_forward.2} parent=5 // pred_region
      %s218 = ssub.s32 %s12, 1
      %s219 = smul.u32 2, %s22
      %p220 = scmp.lt.s32.totalorder %s21, 1
      %s221 = scalar_select %p220, %s21, 1
      %p222 = scmp.lt.s32.totalorder %s219, 1
      %s223 = scalar_select %p222, %s219, 1
      %s224 = smul.addr %s221, 2
      %s225 = sadd.s32 %s223, %s224
      %s226 = smul.addr %s225, 4
      %s227 = scalar_lea.vmem %s0, %s226
      %p228 = pneg %p52
      %p229 = pneg %p49
      %p230 = pneg %p73
      %p231 = pneg %p70
      %p232 = pneg %p94
      %p233 = pneg %p91
      %p234 = pneg %p115
      %p235 = pneg %p112
      %p236 = pneg %p143
      %p237 = pneg %p140
      %s238 = smul.u32 2, %s22
      %p239 = scmp.lt.s32.totalorder %s21, 1
      %s240 = scalar_select %p239, %s21, 1
      %p241 = scmp.lt.s32.totalorder %s238, 1
      %s242 = scalar_select %p241, %s238, 1
      %s243 = smul.addr %s240, 4
      %s244 = sadd.s32 %s242, %s243
      %s245 = smul.addr %s244, 8
      %s246 = scalar_lea.vmem %s4, %s245
      %p247 = pneg %p171
      %p248 = pneg %p168
      %p249 = scmp.lt.s32.totalorder %s21, 1
      %s250 = scalar_select %p249, %s21, 1
      %p251 = scmp.lt.s32.totalorder %s22, 0
      %s252 = scalar_select %p251, %s22, 0
      %s253 = smul.addr %s252, 2
      %s254 = smul.addr %s250, 2
      %s255 = sadd.s32 %s253, %s254
      %s256 = smul.addr %s255, 8
      %s257 = scalar_lea.vmem %s5, %s256
      %s258 = smul.u32 2, %s22
      %p259 = scmp.lt.s32.totalorder %s21, 1
      %s260 = scalar_select %p259, %s21, 1
      %p261 = scmp.lt.s32.totalorder %s258, 1
      %s262 = scalar_select %p261, %s258, 1
      %s263 = smul.addr %s260, 2
      %s264 = sadd.s32 %s262, %s263
      %s265 = smul.addr %s264, 4
      %s266 = scalar_lea.vmem %s0, %s265
      %s267 = smul.u32 2, %s22
      %s268 = smul.u32 2, %s22
      %p269 = scmp.lt.s32.totalorder %s21, 1
      %s270 = scalar_select %p269, %s21, 1
      %p271 = scmp.lt.s32.totalorder %s268, 1
      %s272 = scalar_select %p271, %s268, 1
      %s273 = smul.addr %s270, 4
      %s274 = sadd.s32 %s272, %s273
      %s275 = smul.addr %s274, 8
      %s276 = scalar_lea.vmem %s4, %s275
      %s277 = smul.u32 2, %s22
      %p278 = scmp.lt.s32.totalorder %s21, 1
      %s279 = scalar_select %p278, %s21, 1
      %p280 = scmp.lt.s32.totalorder %s22, 0
      %s281 = scalar_select %p280, %s22, 0
      %s282 = smul.addr %s281, 2
      %s283 = smul.addr %s279, 2
      %s284 = sadd.s32 %s282, %s283
      %s285 = smul.addr %s284, 8
      %s286 = scalar_lea.vmem %s5, %s285
      %v287 = vld [vmem:[%s266] sm:$0xff]
      %v288 = vld [vmem:[%s1] sm:$0xf]
      %290 = vset.pattern.permute.xlu0 0
      %291 = vperm.xlu0 %290, %v288
      %v292 = vpop.permute.xlu0 %291
      %v294 = vunpack.c.l.s4 839922192
      %v295 = vunpack.c.0.s8 %v294
      %v296 = vlaneseq
      %v297 = vshrl.u32 %v296, 7
      %v298 = vsub.s32 %v295, %v297
      %v299 = vrot.slane %v292, %v298
      %v301 = vmul.f32 %v287, %v299
      %v302 = vld [vmem:[%s2] sm:$0xf]
      %304 = vset.pattern.permute.xlu0 0
      %305 = vperm.xlu0 %304, %v302
      %v306 = vpop.permute.xlu0 %305
      %v308 = vunpack.c.l.s4 839922192
      %v309 = vunpack.c.0.s8 %v308
      %v310 = vlaneseq
      %v311 = vshrl.u32 %v310, 7
      %v312 = vsub.s32 %v309, %v311
      %v313 = vrot.slane %v306, %v312
      %v315 = vadd.f32 %v301, %v313
      %v316 = vmax.f32 %v315, 0.0
      %v317 = vld [vmem:[%s3] sm:$0xff]
      %v318 = vld [vmem:[%s3 + $0x8] sm:$0xff]
      %v320 = vcombine.high %v316, %v316
      %vm321 = vcmask 31744
      %v323 = vsel %vm321, %v317, 0
      %v326 = vsel %vm321, %v318, 0
      %vm328 = vcmask 1043456
      %v329 = vsel %vm328, %v316, 0
      %v331 = vsel %vm328, %v320, 0
      %333 = vmatprep.subr.mxu0 0.0
      %334 = vmatpush1.msra.mxu0 0.0
      %335 = vmatprep.subr.mxu0 0.0
      %336 = vmatpush1.msra.mxu0 0.0
      %337 = vmatprep.subr.mxu0 0.0
      %338 = vmatpush1.msra.mxu0 0.0
      %339 = vmatprep.subr.mxu0 0.0
      %340 = vmatpush1.msra.mxu0 0.0
      %341 = vmatprep.subr.mxu0 0.0
      %342 = vmatpush1.msra.mxu0 0.0
      %343 = vmatprep.subr.mxu0 0.0
      %344 = vmatpush1.msra.mxu0 0.0
      %345 = vmatprep.subr.mxu0 0.0
      %346 = vmatpush1.msra.mxu0 0.0
      %347 = vmatprep.subr.mxu0 0.0
      %348 = vmatpush1.msra.mxu0 0.0
      %349 = vmatprep.subr.mxu0 0.0
      %350 = vmatpush1.msra.mxu0 0.0
      %351 = vmatprep.subr.mxu0 0.0
      %352 = vmatpush1.msra.mxu0 0.0
      %353 = vmatprep.subr.mxu0 0.0
      %354 = vmatpush1.msra.mxu0 0.0
      %355 = vmatprep.subr.mxu0 0.0
      %356 = vmatpush1.msra.mxu0 0.0
      %357 = vmatprep.subr.mxu0 0.0
      %358 = vmatpush1.msra.mxu0 0.0
      %359 = vmatprep.subr.mxu0 0.0
      %360 = vmatpush1.msra.mxu0 0.0
      %361 = vmatprep.subr.mxu0 0.0
      %362 = vmatpush1.msra.mxu0 0.0
      %363 = vmatprep.subr.mxu0 %v331
      %364 = vmatpush1.msra.mxu0 %v329
      %365 = vmatprep.subr.mxu0 0.0
      %366 = vmatpush2.msra.mxu0 0.0
      %367 = vmatprep.subr.mxu0 0.0
      %368 = vmatpush2.msra.mxu0 0.0
      %369 = vmatprep.subr.mxu0 0.0
      %370 = vmatpush2.msra.mxu0 0.0
      %371 = vmatprep.subr.mxu0 0.0
      %372 = vmatpush2.msra.mxu0 0.0
      %373 = vmatprep.subr.mxu0 0.0
      %374 = vmatpush2.msra.mxu0 0.0
      %375 = vmatprep.subr.mxu0 0.0
      %376 = vmatpush2.msra.mxu0 0.0
      %377 = vmatprep.subr.mxu0 0.0
      %378 = vmatpush2.msra.mxu0 0.0
      %379 = vmatprep.subr.mxu0 0.0
      %380 = vmatpush2.msra.mxu0 0.0
      %381 = vmatprep.subr.mxu0 0.0
      %382 = vmatpush2.msra.mxu0 0.0
      %383 = vmatprep.subr.mxu0 0.0
      %384 = vmatpush2.msra.mxu0 0.0
      %385 = vmatprep.subr.mxu0 0.0
      %386 = vmatpush2.msra.mxu0 0.0
      %387 = vmatprep.subr.mxu0 0.0
      %388 = vmatpush2.msra.mxu0 0.0
      %389 = vmatprep.subr.mxu0 0.0
      %390 = vmatpush2.msra.mxu0 0.0
      %391 = vmatprep.subr.mxu0 0.0
      %392 = vmatpush2.msra.mxu0 0.0
      %393 = vmatprep.subr.mxu0 0.0
      %394 = vmatpush2.msra.mxu0 0.0
      %395 = vmatprep.subr.mxu0 0.0
      %396 = vmatpush2.msra.mxu0 0.0
      %397 = vmatprep.mubr.f32.mxu0 0.0
      %398 = vmatmul.mubr.f32.gmra.mxu0 %v323
      %v399 = vpop.f32.mrf.mxu0
      %v400 = vadd.f32 0.0, %v399
      %v401 = vpop.f32.mrf.mxu0
      %v402 = vadd.f32 0.0, %v401
      %403 = vmatprep.mubr.f32.mxu0 0.0
      %404 = vmatmul.mubr.f32.gmra.mxu0 %v326
      %v405 = vpop.f32.mrf.mxu0
      %v406 = vadd.f32 0.0, %v405
      %v407 = vpop.f32.mrf.mxu0
      %v408 = vadd.f32 0.0, %v407
      %409 = vdwg.mxu0
      %410 = vst [vmem:[%s276] sm:$0xff] %v400
      %411 = vst [vmem:[%s276 + $0x8] sm:$0xff] %v402
      %412 = vst [vmem:[%s276 + $0x10] sm:$0xff] %v406
      %413 = vst [vmem:[%s276 + $0x18] sm:$0xff] %v408
      %v414 = vadd.f32 %v400, %v402
      %415 = vadd.xlane.f32.xlu0 %v414
      %v416 = vpop.xlane.xlu0 %415
      %v417 = vadd.f32 %v406, %v408
      %418 = vadd.xlane.f32.xlu0 %v417
      %v419 = vpop.xlane.xlu0 %418
      %v420 = vmul.f32 %v400, %v400
      %v421 = vmul.f32 %v402, %v402
      %v422 = vmul.f32 %v406, %v406
      %v423 = vmul.f32 %v408, %v408
      %v424 = vadd.f32 %v420, %v421
      %425 = vadd.xlane.f32.xlu0 %v424
      %v426 = vpop.xlane.xlu0 %425
      %v427 = vadd.f32 %v422, %v423
      %428 = vadd.xlane.f32.xlu0 %v427
      %v429 = vpop.xlane.xlu0 %428
      %vm430 = vcmask 7168
      %v431 = vsel %vm430, %v416, %v426
      %v432 = vsel %vm430, %v419, %v429
      %vm433 = vcmask 15360
      %434 = vst.msk [vmem:[%s286] sm:$0xff] %vm433, %v431
      %435 = vst.msk [vmem:[%s286 + $0x8] sm:$0xff] %vm433, %v432
      %s436 = smul.u32 2, %s22
      %p437 = scmp.lt.s32.totalorder %s21, 1
      %s438 = scalar_select %p437, %s21, 1
      %p439 = scmp.lt.s32.totalorder %s436, 1
      %s440 = scalar_select %p439, %s436, 1
      %s441 = smul.addr %s438, 4
      %s442 = sadd.s32 %s440, %s441
      %s443 = smul.addr %s442, 8
      %s444 = scalar_lea.vmem %s4, %s443
      %p445 = scmp.lt.s32.totalorder %s21, 1
      %s446 = scalar_select %p445, %s21, 1
      %p447 = scmp.lt.s32.totalorder %s22, 0
      %s448 = scalar_select %p447, %s22, 0
      %s449 = smul.addr %s448, 2
      %s450 = smul.addr %s446, 2
      %s451 = sadd.s32 %s449, %s450
      %s452 = smul.addr %s451, 8
      %s453 = scalar_lea.vmem %s5, %s452
      // Predicated region
      $region37: #{bottleneck_forward.2} parent=35 // pred_check
        %p454 = pneg %p140
      $region38: #{bottleneck_forward.2} parent=35 // pred_check_branch
        %456 = sbr.rel (%p454) target = $region40
      $region39: #{bottleneck_forward.2} parent=35 // pred_region
        %s457 = smul.u32 2, %s22
      $region40: #{bottleneck_forward.2} parent=35 // pred_fallthru
        _
      // Predicated region
      $region41: #{bottleneck_forward.2} parent=35 // pred_check
        %p458 = pneg %p168
      $region42: #{bottleneck_forward.2} parent=35 // pred_check_branch
        %460 = sbr.rel (%p458) target = $region44
      $region43: #{bottleneck_forward.2} parent=35 // pred_region
        _
      $region44: #{bottleneck_forward.2} parent=35 // pred_fallthru
        _
    $region36: #{bottleneck_forward.2} parent=5 // pred_fallthru
      _
    %p461 = scmp.le.s32.totalorder 2, %s12
    // Predicated region
    $region45: #{bottleneck_forward.2} parent=5 // pred_check
      %p462 = pneg %p461
    $region46: #{bottleneck_forward.2} parent=5 // pred_check_branch
      %464 = sbr.rel (%p462) target = $region48
    $region47: #{bottleneck_forward.2} parent=5 // pred_region
      %s465 = ssub.s32 %s12, 2
      // Predicated region
      $region49: #{bottleneck_forward.2} parent=47 // pred_check
        %p466 = pneg %p146
      $region50: #{bottleneck_forward.2} parent=47 // pred_check_branch
        %468 = sbr.rel (%p466) target = $region52
      $region51: #{bottleneck_forward.2} parent=47 // pred_region
        %s469 = smul.u32 2, %s24
        %p470 = scmp.lt.s32.totalorder %s23, 1
        %s471 = scalar_select %p470, %s23, 1
        %p472 = scmp.lt.s32.totalorder %s469, 1
        %s473 = scalar_select %p472, %s469, 1
        %s474 = smul.addr %s471, 4
        %s475 = sadd.s32 %s473, %s474
        %s476 = smul.addr %s475, 8
        %s477 = scalar_lea.vmem %s4, %s476
      $region52: #{bottleneck_forward.2} parent=47 // pred_fallthru
        _
      // Predicated region
      $region53: #{bottleneck_forward.2} parent=47 // pred_check
        %p478 = pneg %p174
      $region54: #{bottleneck_forward.2} parent=47 // pred_check_branch
        %480 = sbr.rel (%p478) target = $region56
      $region55: #{bottleneck_forward.2} parent=47 // pred_region
        %p481 = scmp.lt.s32.totalorder %s23, 1
        %s482 = scalar_select %p481, %s23, 1
        %p483 = scmp.lt.s32.totalorder %s24, 0
        %s484 = scalar_select %p483, %s24, 0
        %s485 = smul.addr %s484, 2
        %s486 = smul.addr %s482, 2
        %s487 = sadd.s32 %s485, %s486
        %s488 = smul.addr %s487, 8
        %s489 = scalar_lea.vmem %s5, %s488
      $region56: #{bottleneck_forward.2} parent=47 // pred_fallthru
        _
    $region48: #{bottleneck_forward.2} parent=5 // pred_fallthru
      _
  $region6: #{bottleneck_forward.2} parent=0 // loop_footer
    %s16 = sadd.s32 1, %s12
  $region7: #{bottleneck_forward.2} parent=0 // loop_footer_branch
    %11 = sbr.rel target = $region3
  $region8: #{bottleneck_forward.2} parent=0 // loop_exit
    _

// kernel: bottleneck_forward.3
$region0: #{bottleneck_forward.3}
  #allocation0 [shape = 'u32[]', space=smem, size = 0x4, offset = 0x4, fixed_abs, tag = 'smem constant byte address 0x4 - core index']
  #allocation1 [shape = 'u32[144,128]{1,0:T(1,128)}', space=vmem, size = 0x12000, scoped, tag = 'internal scratch']
  %s0 = inlined_call_operand.vmem [shape: f32[2,4,256], index: 0, kind: input, shape index: {}]
  %s1 = inlined_call_operand.vmem [shape: f32[2,16,256], index: 1, kind: input, shape index: {}]
  %s2 = inlined_call_operand.vmem [shape: f32[16,1], index: 2, kind: input, shape index: {}]
  %s3 = inlined_call_operand.vmem [shape: f32[16,1], index: 3, kind: input, shape index: {}]
  %s4 = inlined_call_operand.vmem [shape: f32[9,4,16], index: 4, kind: input, shape index: {}]
  %s5 = inlined_call_operand.vmem [shape: f32[2,8,256], index: 5, kind: output, shape index: {}]
  %s6 = sld [smem:[#allocation0]]
  $region53: #{bottleneck_forward.3} parent=0
    _
  %s8 = ssub.s32 1, %s6
  %s9 = scalar_select 0, %s8, %s6
  loop: start=0, step=1, limit=4
  $region2: #{bottleneck_forward.3} parent=0 // loop_pre_header
    _
  $region3: #{bottleneck_forward.3} parent=0 // loop_header
    %s11 = sphi 0, %s15
    %p12 = scmp.ge.s32.totalorder %s11, 4
    %s21 = sphi 0, %s23
    %s24 = sphi 0, %s21
    %s25 = sphi 0, %s24
    %s41 = sphi 0, %s25
    %s47 = sphi 0, %s49
    %s50 = sphi 0, %s47
    %s51 = sphi 0, %s50
    %s67 = sphi 0, %s51
    %s71 = sphi 0, %s71
    %s73 = sphi 0, %s71
    %s74 = sphi 0, %s73
    %s88 = sphi 0, %s74
    %s92 = sphi 0, %s92
    %s94 = sphi 0, %s92
    %s95 = sphi 0, %s94
    %s109 = sphi 0, %s95
    %s113 = sphi 0, %s113
    %s115 = sphi 0, %s113
    %s116 = sphi 0, %s115
    %s130 = sphi 0, %s116
    %s136 = sphi 0, %s138
    %s139 = sphi 0, %s136
    %s140 = sphi 0, %s139
    %s156 = sphi 0, %s140
  $region4: #{bottleneck_forward.3} parent=0 // loop_header_branch
    %14 = sbr.rel (%p12) target = $region8
  $region5: #{bottleneck_forward.3} parent=0 // loop_body
    %s16 = ssub.s32 %s11, 1
    %s17 = ssub.s32 %s11, 2
    %s18 = sadd.s32 %s11, 1
    %s19 = ssub.s32 %s11, %s18
    %p20 = scmp.eq.s32.totalorder %s19, 0
    %s22 = sadd.s32 %s21, 1
    %s23 = scalar_select %p20, %s21, %s22
    %p26 = pneg %p20
    %p27 = scmp.eq.s32.totalorder %s11, 1
    %p28 = por %p26, %p27
    %p29 = scmp.ne.s32.totalorder %s21, %s24
    %p30 = scmp.eq.s32.totalorder %s11, 0
    %p31 = por %p29, %p30
    %p32 = scmp.ne.s32.totalorder %s21, %s24
    %p33 = scmp.eq.s32.totalorder %s16, 1
    %p34 = por %p32, %p33
    %p35 = scmp.ne.s32.totalorder %s24, %s25
    %p36 = scmp.eq.s32.totalorder %s16, 0
    %p37 = por %p35, %p36
    %p38 = scmp.ne.s32.totalorder %s24, %s25
    %p39 = scmp.eq.s32.totalorder %s17, 1
    %p40 = por %p38, %p39
    %p42 = scmp.ne.s32.totalorder %s25, %s41
    %p43 = scmp.eq.s32.totalorder %s17, 0
    %p44 = por %p42, %p43
    %s45 = ssub.s32 %s11, %s18
    %p46 = scmp.eq.s32.totalorder %s45, 0
    %s48 = sadd.s32 %s47, 1
    %s49 = scalar_select %p46, %s47, %s48
    %p52 = pneg %p46
    %p53 = scmp.eq.s32.totalorder %s11, 1
    %p54 = por %p52, %p53
    %p55 = scmp.ne.s32.totalorder %s47, %s50
    %p56 = scmp.eq.s32.totalorder %s11, 0
    %p57 = por %p55, %p56
    %p58 = scmp.ne.s32.totalorder %s47, %s50
    %p59 = scmp.eq.s32.totalorder %s16, 1
    %p60 = por %p58, %p59
    %p61 = scmp.ne.s32.totalorder %s50, %s51
    %p62 = scmp.eq.s32.totalorder %s16, 0
    %p63 = por %p61, %p62
    %p64 = scmp.ne.s32.totalorder %s50, %s51
    %p65 = scmp.eq.s32.totalorder %s17, 1
    %p66 = por %p64, %p65
    %p68 = scmp.ne.s32.totalorder %s51, %s67
    %p69 = scmp.eq.s32.totalorder %s17, 0
    %p70 = por %p68, %p69
    %s72 = sadd.s32 %s71, 1
    %p75 = scmp.eq.s32.totalorder %s11, 1
    %p76 = scmp.ne.s32.totalorder %s71, %s73
    %p77 = scmp.eq.s32.totalorder %s11, 0
    %p78 = por %p76, %p77
    %p79 = scmp.ne.s32.totalorder %s71, %s73
    %p80 = scmp.eq.s32.totalorder %s16, 1
    %p81 = por %p79, %p80
    %p82 = scmp.ne.s32.totalorder %s73, %s74
    %p83 = scmp.eq.s32.totalorder %s16, 0
    %p84 = por %p82, %p83
    %p85 = scmp.ne.s32.totalorder %s73, %s74
    %p86 = scmp.eq.s32.totalorder %s17, 1
    %p87 = por %p85, %p86
    %p89 = scmp.ne.s32.totalorder %s74, %s88
    %p90 = scmp.eq.s32.totalorder %s17, 0
    %p91 = por %p89, %p90
    %s93 = sadd.s32 %s92, 1
    %p96 = scmp.eq.s32.totalorder %s11, 1
    %p97 = scmp.ne.s32.totalorder %s92, %s94
    %p98 = scmp.eq.s32.totalorder %s11, 0
    %p99 = por %p97, %p98
    %p100 = scmp.ne.s32.totalorder %s92, %s94
    %p101 = scmp.eq.s32.totalorder %s16, 1
    %p102 = por %p100, %p101
    %p103 = scmp.ne.s32.totalorder %s94, %s95
    %p104 = scmp.eq.s32.totalorder %s16, 0
    %p105 = por %p103, %p104
    %p106 = scmp.ne.s32.totalorder %s94, %s95
    %p107 = scmp.eq.s32.totalorder %s17, 1
    %p108 = por %p106, %p107
    %p110 = scmp.ne.s32.totalorder %s95, %s109
    %p111 = scmp.eq.s32.totalorder %s17, 0
    %p112 = por %p110, %p111
    %s114 = sadd.s32 %s113, 1
    %p117 = scmp.eq.s32.totalorder %s11, 1
    %p118 = scmp.ne.s32.totalorder %s113, %s115
    %p119 = scmp.eq.s32.totalorder %s11, 0
    %p120 = por %p118, %p119
    %p121 = scmp.ne.s32.totalorder %s113, %s115
    %p122 = scmp.eq.s32.totalorder %s16, 1
    %p123 = por %p121, %p122
    %p124 = scmp.ne.s32.totalorder %s115, %s116
    %p125 = scmp.eq.s32.totalorder %s16, 0
    %p126 = por %p124, %p125
    %p127 = scmp.ne.s32.totalorder %s115, %s116
    %p128 = scmp.eq.s32.totalorder %s17, 1
    %p129 = por %p127, %p128
    %p131 = scmp.ne.s32.totalorder %s116, %s130
    %p132 = scmp.eq.s32.totalorder %s17, 0
    %p133 = por %p131, %p132
    %s134 = ssub.s32 %s11, %s18
    %p135 = scmp.eq.s32.totalorder %s134, 0
    %s137 = sadd.s32 %s136, 1
    %s138 = scalar_select %p135, %s136, %s137
    %p141 = pneg %p135
    %p142 = scmp.eq.s32.totalorder %s11, 1
    %p143 = por %p141, %p142
    %p144 = scmp.ne.s32.totalorder %s136, %s139
    %p145 = scmp.eq.s32.totalorder %s11, 0
    %p146 = por %p144, %p145
    %p147 = scmp.ne.s32.totalorder %s136, %s139
    %p148 = scmp.eq.s32.totalorder %s16, 1
    %p149 = por %p147, %p148
    %p150 = scmp.ne.s32.totalorder %s139, %s140
    %p151 = scmp.eq.s32.totalorder %s16, 0
    %p152 = por %p150, %p151
    %p153 = scmp.ne.s32.totalorder %s139, %s140
    %p154 = scmp.eq.s32.totalorder %s17, 1
    %p155 = por %p153, %p154
    %p157 = scmp.ne.s32.totalorder %s140, %s156
    %p158 = scmp.eq.s32.totalorder %s17, 0
    %p159 = por %p157, %p158
    %p160 = scmp.le.s32.totalorder 1, %s11
    %p161 = scmp.lt.s32.totalorder %s11, 3
    %p162 = pnand %p160, %p161
    %p163 = pneg %p162
    // Predicated region
    $region9: #{bottleneck_forward.3} parent=5 // pred_check
      _
    $region10: #{bottleneck_forward.3} parent=5 // pred_check_branch
      %165 = sbr.rel (%p162) target = $region12
    $region11: #{bottleneck_forward.3} parent=5 // pred_region
      %s166 = ssub.s32 %s11, 1
      // Predicated region
      $region13: #{bottleneck_forward.3} parent=11 // pred_check
        %p167 = pneg %p84
      $region14: #{bottleneck_forward.3} parent=11 // pred_check_branch
        %169 = sbr.rel (%p167) target = $region16
      $region15: #{bottleneck_forward.3} parent=11 // pred_region
        _
      $region16: #{bottleneck_forward.3} parent=11 // pred_fallthru
        _
      // Predicated region
      $region17: #{bottleneck_forward.3} parent=11 // pred_check
        %p170 = pneg %p105
      $region18: #{bottleneck_forward.3} parent=11 // pred_check_branch
        %172 = sbr.rel (%p170) target = $region20
      $region19: #{bottleneck_forward.3} parent=11 // pred_region
        _
      $region20: #{bottleneck_forward.3} parent=11 // pred_fallthru
        _
      // Predicated region
      $region21: #{bottleneck_forward.3} parent=11 // pred_check
        %p173 = pneg %p126
      $region22: #{bottleneck_forward.3} parent=11 // pred_check_branch
        %175 = sbr.rel (%p173) target = $region24
      $region23: #{bottleneck_forward.3} parent=11 // pred_region
        _
      $region24: #{bottleneck_forward.3} parent=11 // pred_fallthru
        _
    $region12: #{bottleneck_forward.3} parent=5 // pred_fallthru
      _
    %p176 = scmp.lt.s32.totalorder %s11, 2
    // Predicated region
    $region25: #{bottleneck_forward.3} parent=5 // pred_check
      %p177 = pneg %p176
    $region26: #{bottleneck_forward.3} parent=5 // pred_check_branch
      %179 = sbr.rel (%p177) target = $region28
    $region27: #{bottleneck_forward.3} parent=5 // pred_region
      // Predicated region
      $region29: #{bottleneck_forward.3} parent=27 // pred_check
        %p180 = pneg %p31
      $region30: #{bottleneck_forward.3} parent=27 // pred_check_branch
        %182 = sbr.rel (%p180) target = $region32
      $region31: #{bottleneck_forward.3} parent=27 // pred_region
        %p183 = scmp.lt.s32.totalorder %s11, 1
        %s184 = scalar_select %p183, %s11, 1
        %s185 = smul.addr %s184, 2
        %s186 = smul.addr %s185, 4
        %s187 = scalar_lea.vmem %s0, %s186
      $region32: #{bottleneck_forward.3} parent=27 // pred_fallthru
        _
      // Predicated region
      $region33: #{bottleneck_forward.3} parent=27 // pred_check
        %p188 = pneg %p57
      $region34: #{bottleneck_forward.3} parent=27 // pred_check_branch
        %190 = sbr.rel (%p188) target = $region36
      $region35: #{bottleneck_forward.3} parent=27 // pred_region
        %p191 = scmp.lt.s32.totalorder %s11, 1
        %s192 = scalar_select %p191, %s11, 1
        %s193 = smul.addr %s192, 4
        %s194 = smul.addr %s193, 8
        %s195 = scalar_lea.vmem %s1, %s194
      $region36: #{bottleneck_forward.3} parent=27 // pred_fallthru
        _
    $region28: #{bottleneck_forward.3} parent=5 // pred_fallthru
      _
    %p196 = scmp.le.s32.totalorder 1, %s11
    %p197 = scmp.lt.s32.totalorder %s11, 3
    %p198 = pnand %p196, %p197
    %p199 = pneg %p198
    // Predicated region
    $region37: #{bottleneck_forward.3} parent=5 // pred_check
      _
    $region38: #{bottleneck_forward.3} parent=5 // pred_check_branch
      %201 = sbr.rel (%p198) target = $region40
    $region39: #{bottleneck_forward.3} parent=5 // pred_region
      %s202 = ssub.s32 %s11, 1
      %p203 = scmp.lt.s32.totalorder %s16, 1
      %s204 = scalar_select %p203, %s16, 1
      %s205 = smul.addr %s204, 2
      %s206 = smul.addr %s205, 4
      %s207 = scalar_lea.vmem %s0, %s206
      %p208 = pneg %p37
      %p209 = pneg %p34
      %p210 = scmp.lt.s32.totalorder %s16, 1
      %s211 = scalar_select %p210, %s16, 1
      %s212 = smul.addr %s211, 4
      %s213 = smul.addr %s212, 8
      %s214 = scalar_lea.vmem %s1, %s213
      %p215 = pneg %p63
      %p216 = pneg %p60
      %p217 = pneg %p84
      %p218 = pneg %p81
      %p219 = pneg %p105
      %p220 = pneg %p102
      %p221 = pneg %p126
      %p222 = pneg %p123
      %p223 = pneg %p152
      %p224 = pneg %p149
      %p225 = scmp.lt.s32.totalorder %s16, 1
      %s226 = scalar_select %p225, %s16, 1
      %s227 = smul.addr %s226, 2
      %s228 = smul.addr %s227, 8
      %s229 = scalar_lea.vmem %s5, %s228
      %p230 = scmp.lt.s32.totalorder %s16, 1
      %s231 = scalar_select %p230, %s16, 1
      %s232 = smul.addr %s231, 2
      %s233 = smul.addr %s232, 4
      %s234 = scalar_lea.vmem %s0, %s233
      %p235 = scmp.lt.s32.totalorder %s16, 1
      %s236 = scalar_select %p235, %s16, 1
      %s237 = smul.addr %s236, 4
      %s238 = smul.addr %s237, 8
      %s239 = scalar_lea.vmem %s1, %s238
      %p240 = scmp.lt.s32.totalorder %s16, 1
      %s241 = scalar_select %p240, %s16, 1
      %s242 = smul.addr %s241, 2
      %s243 = smul.addr %s242, 8
      %s244 = scalar_lea.vmem %s5, %s243
      %v245 = vld [vmem:[%s239] sm:$0xff]
      %v246 = vld [vmem:[%s239 + $0x8] sm:$0xff]
      %v247 = vld [vmem:[%s239 + $0x10] sm:$0xff]
      %v248 = vld [vmem:[%s239 + $0x18] sm:$0xff]
      %v249 = vld [vmem:[%s2] sm:$0xff]
      %v250 = vld [vmem:[%s2 + $0x8] sm:$0xff]
      %252 = vset.pattern.permute.xlu0 0
      %253 = vperm.xlu0 %252, %v249
      %v254 = vpop.permute.xlu0 %253
      %257 = vset.pattern.permute.xlu0 0
      %258 = vperm.xlu0 %257, %v250
      %v259 = vpop.permute.xlu0 %258
      %v261 = vmul.f32 %v245, %v254
      %v262 = vmul.f32 %v246, %v254
      %v263 = vmul.f32 %v247, %v259
      %v264 = vmul.f32 %v248, %v259
      %v265 = vld [vmem:[%s3] sm:$0xff]
      %v266 = vld [vmem:[%s3 + $0x8] sm:$0xff]
      %268 = vset.pattern.permute.xlu0 0
      %269 = vperm.xlu0 %268, %v265
      %v270 = vpop.permute.xlu0 %269
      %273 = vset.pattern.permute.xlu0 0
      %274 = vperm.xlu0 %273, %v266
      %v275 = vpop.permute.xlu0 %274
      %v277 = vadd.f32 %v261, %v270
      %v278 = vadd.f32 %v262, %v270
      %v279 = vadd.f32 %v263, %v275
      %v280 = vadd.f32 %v264, %v275
      %v281 = vmax.f32 %v277, 0.0
      %v282 = vmax.f32 %v278, 0.0
      %v283 = vmax.f32 %v279, 0.0
      %v284 = vmax.f32 %v280, 0.0
      %289 = vrot.lane.b32.xlu0 %v281, 17
      %v290 = vpop.permute.xlu0 %289
      %291 = vrot.lane.b32.xlu0 %v282, 17
      %v292 = vpop.permute.xlu0 %291
      %293 = vrot.lane.b32.xlu0 %v283, 17
      %v294 = vpop.permute.xlu0 %293
      %295 = vrot.lane.b32.xlu0 %v284, 17
      %v296 = vpop.permute.xlu0 %295
      %vm297 = vcmask 138240
      %v298 = vsel %vm297, %v290, %v292
      %v299 = vsel %vm297, %v294, %v296
      %v306 = vsel %vm297, 0.0, %v290
      %v307 = vsel %vm297, 0.0, %v294
      %v308 = vsel %vm297, %v292, 0.0
      %v309 = vsel %vm297, %v296, 0.0
      %v310 = vlaneseq
      %v311 = vand.u32 %v310, 127
      %v312 = vadd.s32 %v311, 128
      %vm313 = vcmp.lt.s32.totalorder %v311, 0
      %v314 = vsub.s32 0, %v311
      %v315 = vsel %vm313, %v314, %v311
      %v316 = vshrl.u32 %v315, 4
      %v317 = vand.u32 %v315, 15
      %v318 = vsub.s32 0, %v317
      %v319 = vsel %vm313, %v318, %v317
      %vm320 = vcmp.lt.s32.totalorder %v312, 0
      %v321 = vsub.s32 0, %v312
      %v322 = vsel %vm320, %v321, %v312
      %v323 = vshrl.u32 %v322, 4
      %v324 = vand.u32 %v322, 15
      %v325 = vsub.s32 0, %v324
      %v326 = vsel %vm320, %v325, %v324
      %vm327 = vcmp.ne.s32.totalorder %v319, 0
      %vm328 = vcmp.ne.s32.totalorder %v326, 0
      %vm329 = vcmp.lt.s32.totalorder %v319, 0
      %vm330 = vcmp.lt.s32.totalorder %v326, 0
      %vm331 = vmand %vm329, %vm327
      %vm332 = vmand %vm330, %vm328
      %v333 = vadd.s32 %v319, 16
      %v334 = vadd.s32 %v326, 16
      %v335 = vsel %vm331, %v333, %v319
      %v336 = vsel %vm332, %v334, %v326
      %vm337 = vcmp.ge.s32.totalorder %v335, 1
      %vm338 = vcmp.ge.s32.totalorder %v336, 1
      %v339 = vsel %vm337, 1, 0
      %v340 = vsel %vm338, 1, 0
      %v341 = vcvt.s32.f32 %v339
      %v342 = vcvt.s32.f32 %v340
      %vm343 = vcmp.le.s32.totalorder %v335, 14
      %vm344 = vcmp.le.s32.totalorder %v336, 14
      %v345 = vsel %vm343, 1, 0
      %v346 = vsel %vm344, 1, 0
      %v347 = vcvt.s32.f32 %v345
      %v348 = vcvt.s32.f32 %v346
      %v349 = vld [vmem:[%s4] sm:$0xf]
      %vm350 = vcmask 130048
      %v352 = vsel %vm350, %v349, 0
      %354 = vmatprep.subr.mxu0 0.0
      %355 = vmatpush1.msra.mxu0 0.0
      %356 = vmatprep.subr.mxu0 0.0
      %357 = vmatpush1.msra.mxu0 0.0
      %358 = vmatprep.subr.mxu0 0.0
      %359 = vmatpush1.msra.mxu0 0.0
      %360 = vmatprep.subr.mxu0 0.0
      %361 = vmatpush1.msra.mxu0 0.0
      %362 = vmatprep.subr.mxu0 0.0
      %363 = vmatpush1.msra.mxu0 0.0
      %364 = vmatprep.subr.mxu0 0.0
      %365 = vmatpush1.msra.mxu0 0.0
      %366 = vmatprep.subr.mxu0 0.0
      %367 = vmatpush1.msra.mxu0 0.0
      %368 = vmatprep.subr.mxu0 0.0
      %369 = vmatpush1.msra.mxu0 0.0
      %370 = vmatprep.subr.mxu0 0.0
      %371 = vmatpush1.msra.mxu0 0.0
      %372 = vmatprep.subr.mxu0 0.0
      %373 = vmatpush1.msra.mxu0 0.0
      %374 = vmatprep.subr.mxu0 0.0
      %375 = vmatpush1.msra.mxu0 0.0
      %376 = vmatprep.subr.mxu0 0.0
      %377 = vmatpush1.msra.mxu0 0.0
      %378 = vmatprep.subr.mxu0 0.0
      %379 = vmatpush1.msra.mxu0 0.0
      %380 = vmatprep.subr.mxu0 0.0
      %381 = vmatpush1.msra.mxu0 0.0
      %382 = vmatprep.subr.mxu0 %v299
      %383 = vmatpush1.msra.mxu0 %v307
      %384 = vmatprep.subr.mxu0 %v298
      %385 = vmatpush1.msra.mxu0 %v306
      %386 = vmatprep.subr.mxu0 0.0
      %387 = vmatpush2.msra.mxu0 0.0
      %388 = vmatprep.subr.mxu0 0.0
      %389 = vmatpush2.msra.mxu0 0.0
      %390 = vmatprep.subr.mxu0 0.0
      %391 = vmatpush2.msra.mxu0 0.0
      %392 = vmatprep.subr.mxu0 0.0
      %393 = vmatpush2.msra.mxu0 0.0
      %394 = vmatprep.subr.mxu0 0.0
      %395 = vmatpush2.msra.mxu0 0.0
      %396 = vmatprep.subr.mxu0 0.0
      %397 = vmatpush2.msra.mxu0 0.0
      %398 = vmatprep.subr.mxu0 0.0
      %399 = vmatpush2.msra.mxu0 0.0
      %400 = vmatprep.subr.mxu0 0.0
      %401 = vmatpush2.msra.mxu0 0.0
      %402 = vmatprep.subr.mxu0 0.0
      %403 = vmatpush2.msra.mxu0 0.0
      %404 = vmatprep.subr.mxu0 0.0
      %405 = vmatpush2.msra.mxu0 0.0
      %406 = vmatprep.subr.mxu0 0.0
      %407 = vmatpush2.msra.mxu0 0.0
      %408 = vmatprep.subr.mxu0 0.0
      %409 = vmatpush2.msra.mxu0 0.0
      %410 = vmatprep.subr.mxu0 0.0
      %411 = vmatpush2.msra.mxu0 0.0
      %412 = vmatprep.subr.mxu0 0.0
      %413 = vmatpush2.msra.mxu0 0.0
      %414 = vmatprep.subr.mxu0 0.0
      %415 = vmatpush2.msra.mxu0 0.0
      %416 = vmatprep.subr.mxu0 0.0
      %417 = vmatpush2.msra.mxu0 0.0
      %418 = vmatprep.mubr.f32.mxu0 0.0
      %419 = vmatmul.mubr.f32.gmra.mxu0 %v352
      %v420 = vpop.f32.mrf.mxu0
      %v421 = vadd.f32 0.0, %v420
      %v422 = vpop.f32.mrf.mxu0
      %v423 = vadd.f32 0.0, %v422
      %424 = vdwg.mxu0
      %v425 = vmul.f32 %v421, %v341
      %v426 = vmul.f32 %v423, %v342
      %v427 = vadd.f32 %v425, 0.0
      %v428 = vadd.f32 %v426, 0.0
      %s429 = scalar_lea.vmem %s4, 4
      %v430 = vld [vmem:[%s429] sm:$0xf]
      %435 = vrot.lane.b32.xlu0 %v306, 127
      %v436 = vpop.permute.xlu0 %435
      %437 = vrot.lane.b32.xlu0 %v298, 127
      %v438 = vpop.permute.xlu0 %437
      %439 = vrot.lane.b32.xlu0 %v308, 127
      %v440 = vpop.permute.xlu0 %439
      %441 = vrot.lane.b32.xlu0 %v307, 127
      %v442 = vpop.permute.xlu0 %441
      %443 = vrot.lane.b32.xlu0 %v299, 127
      %v444 = vpop.permute.xlu0 %443
      %445 = vrot.lane.b32.xlu0 %v309, 127
      %v446 = vpop.permute.xlu0 %445
      %vm447 = vcmask 1039360
      %v448 = vsel %vm447, %v436, %v438
      %v449 = vsel %vm447, %v438, %v440
      %v450 = vsel %vm447, %v442, %v444
      %v451 = vsel %vm447, %v444, %v446
      %v457 = vsel %vm350, %v430, 0
      %459 = vmatprep.subr.mxu0 0.0
      %460 = vmatpush1.msra.mxu0 0.0
      %461 = vmatprep.subr.mxu0 0.0
      %462 = vmatpush1.msra.mxu0 0.0
      %463 = vmatprep.subr.mxu0 0.0
      %464 = vmatpush1.msra.mxu0 0.0
      %465 = vmatprep.subr.mxu0 0.0
      %466 = vmatpush1.msra.mxu0 0.0
      %467 = vmatprep.subr.mxu0 0.0
      %468 = vmatpush1.msra.mxu0 0.0
      %469 = vmatprep.subr.mxu0 0.0
      %470 = vmatpush1.msra.mxu0 0.0
      %471 = vmatprep.subr.mxu0 0.0
      %472 = vmatpush1.msra.mxu0 0.0
      %473 = vmatprep.subr.mxu0 0.0
      %474 = vmatpush1.msra.mxu0 0.0
      %475 = vmatprep.subr.mxu0 0.0
      %476 = vmatpush1.msra.mxu0 0.0
      %477 = vmatprep.subr.mxu0 0.0
      %478 = vmatpush1.msra.mxu0 0.0
      %479 = vmatprep.subr.mxu0 0.0
      %480 = vmatpush1.msra.mxu0 0.0
      %481 = vmatprep.subr.mxu0 0.0
      %482 = vmatpush1.msra.mxu0 0.0
      %483 = vmatprep.subr.mxu0 0.0
      %484 = vmatpush1.msra.mxu0 0.0
      %485 = vmatprep.subr.mxu0 0.0
      %486 = vmatpush1.msra.mxu0 0.0
      %487 = vmatprep.subr.mxu0 %v451
      %488 = vmatpush1.msra.mxu0 %v450
      %489 = vmatprep.subr.mxu0 %v449
      %490 = vmatpush1.msra.mxu0 %v448
      %491 = vmatprep.subr.mxu0 0.0
      %492 = vmatpush2.msra.mxu0 0.0
      %493 = vmatprep.subr.mxu0 0.0
      %494 = vmatpush2.msra.mxu0 0.0
      %495 = vmatprep.subr.mxu0 0.0
      %496 = vmatpush2.msra.mxu0 0.0
      %497 = vmatprep.subr.mxu0 0.0
      %498 = vmatpush2.msra.mxu0 0.0
      %499 = vmatprep.subr.mxu0 0.0
      %500 = vmatpush2.msra.mxu0 0.0
      %501 = vmatprep.subr.mxu0 0.0
      %502 = vmatpush2.msra.mxu0 0.0
      %503 = vmatprep.subr.mxu0 0.0
      %504 = vmatpush2.msra.mxu0 0.0
      %505 = vmatprep.subr.mxu0 0.0
      %506 = vmatpush2.msra.mxu0 0.0
      %507 = vmatprep.subr.mxu0 0.0
      %508 = vmatpush2.msra.mxu0 0.0
      %509 = vmatprep.subr.mxu0 0.0
      %510 = vmatpush2.msra.mxu0 0.0
      %511 = vmatprep.subr.mxu0 0.0
      %512 = vmatpush2.msra.mxu0 0.0
      %513 = vmatprep.subr.mxu0 0.0
      %514 = vmatpush2.msra.mxu0 0.0
      %515 = vmatprep.subr.mxu0 0.0
      %516 = vmatpush2.msra.mxu0 0.0
      %517 = vmatprep.subr.mxu0 0.0
      %518 = vmatpush2.msra.mxu0 0.0
      %519 = vmatprep.subr.mxu0 0.0
      %520 = vmatpush2.msra.mxu0 0.0
      %521 = vmatprep.subr.mxu0 0.0
      %522 = vmatpush2.msra.mxu0 0.0
      %523 = vmatprep.mubr.f32.mxu0 0.0
      %524 = vmatmul.mubr.f32.gmra.mxu0 %v457
      %v525 = vpop.f32.mrf.mxu0
      %v526 = vadd.f32 0.0, %v525
      %v527 = vpop.f32.mrf.mxu0
      %v528 = vadd.f32 0.0, %v527
      %529 = vdwg.mxu0
      %v530 = vadd.f32 %v427, %v526
      %v531 = vadd.f32 %v428, %v528
      %s532 = scalar_lea.vmem %s4, 8
      %v533 = vld [vmem:[%s532] sm:$0xf]
      %534 = vrot.lane.b32.xlu0 %v306, 126
      %v535 = vpop.permute.xlu0 %534
      %536 = vrot.lane.b32.xlu0 %v298, 126
      %v537 = vpop.permute.xlu0 %536
      %538 = vrot.lane.b32.xlu0 %v308, 126
      %v539 = vpop.permute.xlu0 %538
      %540 = vrot.lane.b32.xlu0 %v307, 126
      %v541 = vpop.permute.xlu0 %540
      %542 = vrot.lane.b32.xlu0 %v299, 126
      %v543 = vpop.permute.xlu0 %542
      %544 = vrot.lane.b32.xlu0 %v309, 126
      %v545 = vpop.permute.xlu0 %544
      %vm546 = vcmask 1031168
      %v547 = vsel %vm546, %v535, %v537
      %v548 = vsel %vm546, %v537, %v539
      %v549 = vsel %vm546, %v541, %v543
      %v550 = vsel %vm546, %v543, %v545
      %v556 = vsel %vm350, %v533, 0
      %558 = vmatprep.subr.mxu0 0.0
      %559 = vmatpush1.msra.mxu0 0.0
      %560 = vmatprep.subr.mxu0 0.0
      %561 = vmatpush1.msra.mxu0 0.0
      %562 = vmatprep.subr.mxu0 0.0
      %563 = vmatpush1.msra.mxu0 0.0
      %564 = vmatprep.subr.mxu0 0.0
      %565 = vmatpush1.msra.mxu0 0.0
      %566 = vmatprep.subr.mxu0 0.0
      %567 = vmatpush1.msra.mxu0 0.0
      %568 = vmatprep.subr.mxu0 0.0
      %569 = vmatpush1.msra.mxu0 0.0
      %570 = vmatprep.subr.mxu0 0.0
      %571 = vmatpush1.msra.mxu0 0.0
      %572 = vmatprep.subr.mxu0 0.0
      %573 = vmatpush1.msra.mxu0 0.0
      %574 = vmatprep.subr.mxu0 0.0
      %575 = vmatpush1.msra.mxu0 0.0
      %576 = vmatprep.subr.mxu0 0.0
      %577 = vmatpush1.msra.mxu0 0.0
      %578 = vmatprep.subr.mxu0 0.0
      %579 = vmatpush1.msra.mxu0 0.0
      %580 = vmatprep.subr.mxu0 0.0
      %581 = vmatpush1.msra.mxu0 0.0
      %582 = vmatprep.subr.mxu0 0.0
      %583 = vmatpush1.msra.mxu0 0.0
      %584 = vmatprep.subr.mxu0 0.0
      %585 = vmatpush1.msra.mxu0 0.0
      %586 = vmatprep.subr.mxu0 %v550
      %587 = vmatpush1.msra.mxu0 %v549
      %588 = vmatprep.subr.mxu0 %v548
      %589 = vmatpush1.msra.mxu0 %v547
      %590 = vmatprep.subr.mxu0 0.0
      %591 = vmatpush2.msra.mxu0 0.0
      %592 = vmatprep.subr.mxu0 0.0
      %593 = vmatpush2.msra.mxu0 0.0
      %594 = vmatprep.subr.mxu0 0.0
      %595 = vmatpush2.msra.mxu0 0.0
      %596 = vmatprep.subr.mxu0 0.0
      %597 = vmatpush2.msra.mxu0 0.0
      %598 = vmatprep.subr.mxu0 0.0
      %599 = vmatpush2.msra.mxu0 0.0
      %600 = vmatprep.subr.mxu0 0.0
      %601 = vmatpush2.msra.mxu0 0.0
      %602 = vmatprep.subr.mxu0 0.0
      %603 = vmatpush2.msra.mxu0 0.0
      %604 = vmatprep.subr.mxu0 0.0
      %605 = vmatpush2.msra.mxu0 0.0
      %606 = vmatprep.subr.mxu0 0.0
      %607 = vmatpush2.msra.mxu0 0.0
      %608 = vmatprep.subr.mxu0 0.0
      %609 = vmatpush2.msra.mxu0 0.0
      %610 = vmatprep.subr.mxu0 0.0
      %611 = vmatpush2.msra.mxu0 0.0
      %612 = vmatprep.subr.mxu0 0.0
      %613 = vmatpush2.msra.mxu0 0.0
      %614 = vmatprep.subr.mxu0 0.0
      %615 = vmatpush2.msra.mxu0 0.0
      %616 = vmatprep.subr.mxu0 0.0
      %617 = vmatpush2.msra.mxu0 0.0
      %618 = vmatprep.subr.mxu0 0.0
      %619 = vmatpush2.msra.mxu0 0.0
      %620 = vmatprep.subr.mxu0 0.0
      %621 = vmatpush2.msra.mxu0 0.0
      %622 = vmatprep.mubr.f32.mxu0 0.0
      %623 = vmatmul.mubr.f32.gmra.mxu0 %v556
      %v624 = vpop.f32.mrf.mxu0
      %v625 = vadd.f32 0.0, %v624
      %v626 = vpop.f32.mrf.mxu0
      %v627 = vadd.f32 0.0, %v626
      %628 = vdwg.mxu0
      %v629 = vmul.f32 %v625, %v347
      %v630 = vmul.f32 %v627, %v348
      %v631 = vadd.f32 %v530, %v629
      %v632 = vadd.f32 %v531, %v630
      %s633 = scalar_lea.vmem %s4, 12
      %v634 = vld [vmem:[%s633] sm:$0xf]
      %635 = vrot.lane.b32.xlu0 %v306, 112
      %v636 = vpop.permute.xlu0 %635
      %637 = vrot.lane.b32.xlu0 %v298, 112
      %v638 = vpop.permute.xlu0 %637
      %639 = vrot.lane.b32.xlu0 %v308, 112
      %v640 = vpop.permute.xlu0 %639
      %641 = vrot.lane.b32.xlu0 %v307, 112
      %v642 = vpop.permute.xlu0 %641
      %643 = vrot.lane.b32.xlu0 %v299, 112
      %v644 = vpop.permute.xlu0 %643
      %645 = vrot.lane.b32.xlu0 %v309, 112
      %v646 = vpop.permute.xlu0 %645
      %vm647 = vcmask 916480
      %v648 = vsel %vm647, %v636, %v638
      %v649 = vsel %vm647, %v638, %v640
      %v650 = vsel %vm647, %v642, %v644
      %v651 = vsel %vm647, %v644, %v646
      %v657 = vsel %vm350, %v634, 0
      %659 = vmatprep.subr.mxu0 0.0
      %660 = vmatpush1.msra.mxu0 0.0
      %661 = vmatprep.subr.mxu0 0.0
      %662 = vmatpush1.msra.mxu0 0.0
      %663 = vmatprep.subr.mxu0 0.0
      %664 = vmatpush1.msra.mxu0 0.0
      %665 = vmatprep.subr.mxu0 0.0
      %666 = vmatpush1.msra.mxu0 0.0
      %667 = vmatprep.subr.mxu0 0.0
      %668 = vmatpush1.msra.mxu0 0.0
      %669 = vmatprep.subr.mxu0 0.0
      %670 = vmatpush1.msra.mxu0 0.0
      %671 = vmatprep.subr.mxu0 0.0
      %672 = vmatpush1.msra.mxu0 0.0
      %673 = vmatprep.subr.mxu0 0.0
      %674 = vmatpush1.msra.mxu0 0.0
      %675 = vmatprep.subr.mxu0 0.0
      %676 = vmatpush1.msra.mxu0 0.0
      %677 = vmatprep.subr.mxu0 0.0
      %678 = vmatpush1.msra.mxu0 0.0
      %679 = vmatprep.subr.mxu0 0.0
      %680 = vmatpush1.msra.mxu0 0.0
      %681 = vmatprep.subr.mxu0 0.0
      %682 = vmatpush1.msra.mxu0 0.0
      %683 = vmatprep.subr.mxu0 0.0
      %684 = vmatpush1.msra.mxu0 0.0
      %685 = vmatprep.subr.mxu0 0.0
      %686 = vmatpush1.msra.mxu0 0.0
      %687 = vmatprep.subr.mxu0 %v651
      %688 = vmatpush1.msra.mxu0 %v650
      %689 = vmatprep.subr.mxu0 %v649
      %690 = vmatpush1.msra.mxu0 %v648
      %691 = vmatprep.subr.mxu0 0.0
      %692 = vmatpush2.msra.mxu0 0.0
      %693 = vmatprep.subr.mxu0 0.0
      %694 = vmatpush2.msra.mxu0 0.0
      %695 = vmatprep.subr.mxu0 0.0
      %696 = vmatpush2.msra.mxu0 0.0
      %697 = vmatprep.subr.mxu0 0.0
      %698 = vmatpush2.msra.mxu0 0.0
      %699 = vmatprep.subr.mxu0 0.0
      %700 = vmatpush2.msra.mxu0 0.0
      %701 = vmatprep.subr.mxu0 0.0
      %702 = vmatpush2.msra.mxu0 0.0
      %703 = vmatprep.subr.mxu0 0.0
      %704 = vmatpush2.msra.mxu0 0.0
      %705 = vmatprep.subr.mxu0 0.0
      %706 = vmatpush2.msra.mxu0 0.0
      %707 = vmatprep.subr.mxu0 0.0
      %708 = vmatpush2.msra.mxu0 0.0
      %709 = vmatprep.subr.mxu0 0.0
      %710 = vmatpush2.msra.mxu0 0.0
      %711 = vmatprep.subr.mxu0 0.0
      %712 = vmatpush2.msra.mxu0 0.0
      %713 = vmatprep.subr.mxu0 0.0
      %714 = vmatpush2.msra.mxu0 0.0
      %715 = vmatprep.subr.mxu0 0.0
      %716 = vmatpush2.msra.mxu0 0.0
      %717 = vmatprep.subr.mxu0 0.0
      %718 = vmatpush2.msra.mxu0 0.0
      %719 = vmatprep.subr.mxu0 0.0
      %720 = vmatpush2.msra.mxu0 0.0
      %721 = vmatprep.subr.mxu0 0.0
      %722 = vmatpush2.msra.mxu0 0.0
      %723 = vmatprep.mubr.f32.mxu0 0.0
      %724 = vmatmul.mubr.f32.gmra.mxu0 %v657
      %v725 = vpop.f32.mrf.mxu0
      %v726 = vadd.f32 0.0, %v725
      %v727 = vpop.f32.mrf.mxu0
      %v728 = vadd.f32 0.0, %v727
      %729 = vdwg.mxu0
      %v730 = vmul.f32 %v726, %v341
      %v731 = vmul.f32 %v728, %v342
      %v732 = vadd.f32 %v631, %v730
      %v733 = vadd.f32 %v632, %v731
      %s734 = scalar_lea.vmem %s4, 16
      %v735 = vld [vmem:[%s734] sm:$0xf]
      %736 = vrot.lane.b32.xlu0 %v306, 111
      %v737 = vpop.permute.xlu0 %736
      %738 = vrot.lane.b32.xlu0 %v298, 111
      %v739 = vpop.permute.xlu0 %738
      %740 = vrot.lane.b32.xlu0 %v308, 111
      %v741 = vpop.permute.xlu0 %740
      %742 = vrot.lane.b32.xlu0 %v307, 111
      %v743 = vpop.permute.xlu0 %742
      %744 = vrot.lane.b32.xlu0 %v299, 111
      %v745 = vpop.permute.xlu0 %744
      %746 = vrot.lane.b32.xlu0 %v309, 111
      %v747 = vpop.permute.xlu0 %746
      %vm748 = vcmask 908288
      %v749 = vsel %vm748, %v737, %v739
      %v750 = vsel %vm748, %v739, %v741
      %v751 = vsel %vm748, %v743, %v745
      %v752 = vsel %vm748, %v745, %v747
      %v758 = vsel %vm350, %v735, 0
      %760 = vmatprep.subr.mxu0 0.0
      %761 = vmatpush1.msra.mxu0 0.0
      %762 = vmatprep.subr.mxu0 0.0
      %763 = vmatpush1.msra.mxu0 0.0
      %764 = vmatprep.subr.mxu0 0.0
      %765 = vmatpush1.msra.mxu0 0.0
      %766 = vmatprep.subr.mxu0 0.0
      %767 = vmatpush1.msra.mxu0 0.0
      %768 = vmatprep.subr.mxu0 0.0
      %769 = vmatpush1.msra.mxu0 0.0
      %770 = vmatprep.subr.mxu0 0.0
      %771 = vmatpush1.msra.mxu0 0.0
      %772 = vmatprep.subr.mxu0 0.0
      %773 = vmatpush1.msra.mxu0 0.0
      %774 = vmatprep.subr.mxu0 0.0
      %775 = vmatpush1.msra.mxu0 0.0
      %776 = vmatprep.subr.mxu0 0.0
      %777 = vmatpush1.msra.mxu0 0.0
      %778 = vmatprep.subr.mxu0 0.0
      %779 = vmatpush1.msra.mxu0 0.0
      %780 = vmatprep.subr.mxu0 0.0
      %781 = vmatpush1.msra.mxu0 0.0
      %782 = vmatprep.subr.mxu0 0.0
      %783 = vmatpush1.msra.mxu0 0.0
      %784 = vmatprep.subr.mxu0 0.0
      %785 = vmatpush1.msra.mxu0 0.0
      %786 = vmatprep.subr.mxu0 0.0
      %787 = vmatpush1.msra.mxu0 0.0
      %788 = vmatprep.subr.mxu0 %v752
      %789 = vmatpush1.msra.mxu0 %v751
      %790 = vmatprep.subr.mxu0 %v750
      %791 = vmatpush1.msra.mxu0 %v749
      %792 = vmatprep.subr.mxu0 0.0
      %793 = vmatpush2.msra.mxu0 0.0
      %794 = vmatprep.subr.mxu0 0.0
      %795 = vmatpush2.msra.mxu0 0.0
      %796 = vmatprep.subr.mxu0 0.0
      %797 = vmatpush2.msra.mxu0 0.0
      %798 = vmatprep.subr.mxu0 0.0
      %799 = vmatpush2.msra.mxu0 0.0
      %800 = vmatprep.subr.mxu0 0.0
      %801 = vmatpush2.msra.mxu0 0.0
      %802 = vmatprep.subr.mxu0 0.0
      %803 = vmatpush2.msra.mxu0 0.0
      %804 = vmatprep.subr.mxu0 0.0
      %805 = vmatpush2.msra.mxu0 0.0
      %806 = vmatprep.subr.mxu0 0.0
      %807 = vmatpush2.msra.mxu0 0.0
      %808 = vmatprep.subr.mxu0 0.0
      %809 = vmatpush2.msra.mxu0 0.0
      %810 = vmatprep.subr.mxu0 0.0
      %811 = vmatpush2.msra.mxu0 0.0
      %812 = vmatprep.subr.mxu0 0.0
      %813 = vmatpush2.msra.mxu0 0.0
      %814 = vmatprep.subr.mxu0 0.0
      %815 = vmatpush2.msra.mxu0 0.0
      %816 = vmatprep.subr.mxu0 0.0
      %817 = vmatpush2.msra.mxu0 0.0
      %818 = vmatprep.subr.mxu0 0.0
      %819 = vmatpush2.msra.mxu0 0.0
      %820 = vmatprep.subr.mxu0 0.0
      %821 = vmatpush2.msra.mxu0 0.0
      %822 = vmatprep.subr.mxu0 0.0
      %823 = vmatpush2.msra.mxu0 0.0
      %824 = vmatprep.mubr.f32.mxu0 0.0
      %825 = vmatmul.mubr.f32.gmra.mxu0 %v758
      %v826 = vpop.f32.mrf.mxu0
      %v827 = vadd.f32 0.0, %v826
      %v828 = vpop.f32.mrf.mxu0
      %v829 = vadd.f32 0.0, %v828
      %830 = vdwg.mxu0
      %v831 = vadd.f32 %v732, %v827
      %v832 = vadd.f32 %v733, %v829
      %s833 = scalar_lea.vmem %s4, 20
      %v834 = vld [vmem:[%s833] sm:$0xf]
      %835 = vrot.lane.b32.xlu0 %v306, 110
      %v836 = vpop.permute.xlu0 %835
      %837 = vrot.lane.b32.xlu0 %v298, 110
      %v838 = vpop.permute.xlu0 %837
      %839 = vrot.lane.b32.xlu0 %v308, 110
      %v840 = vpop.permute.xlu0 %839
      %841 = vrot.lane.b32.xlu0 %v307, 110
      %v842 = vpop.permute.xlu0 %841
      %843 = vrot.lane.b32.xlu0 %v299, 110
      %v844 = vpop.permute.xlu0 %843
      %845 = vrot.lane.b32.xlu0 %v309, 110
      %v846 = vpop.permute.xlu0 %845
      %vm847 = vcmask 900096
      %v848 = vsel %vm847, %v836, %v838
      %v849 = vsel %vm847, %v838, %v840
      %v850 = vsel %vm847, %v842, %v844
      %v851 = vsel %vm847, %v844, %v846
      %v857 = vsel %vm350, %v834, 0
      %859 = vmatprep.subr.mxu0 0.0
      %860 = vmatpush1.msra.mxu0 0.0
      %861 = vmatprep.subr.mxu0 0.0
      %862 = vmatpush1.msra.mxu0 0.0
      %863 = vmatprep.subr.mxu0 0.0
      %864 = vmatpush1.msra.mxu0 0.0
      %865 = vmatprep.subr.mxu0 0.0
      %866 = vmatpush1.msra.mxu0 0.0
      %867 = vmatprep.subr.mxu0 0.0
      %868 = vmatpush1.msra.mxu0 0.0
      %869 = vmatprep.subr.mxu0 0.0
      %870 = vmatpush1.msra.mxu0 0.0
      %871 = vmatprep.subr.mxu0 0.0
      %872 = vmatpush1.msra.mxu0 0.0
      %873 = vmatprep.subr.mxu0 0.0
      %874 = vmatpush1.msra.mxu0 0.0
      %875 = vmatprep.subr.mxu0 0.0
      %876 = vmatpush1.msra.mxu0 0.0
      %877 = vmatprep.subr.mxu0 0.0
      %878 = vmatpush1.msra.mxu0 0.0
      %879 = vmatprep.subr.mxu0 0.0
      %880 = vmatpush1.msra.mxu0 0.0
      %881 = vmatprep.subr.mxu0 0.0
      %882 = vmatpush1.msra.mxu0 0.0
      %883 = vmatprep.subr.mxu0 0.0
      %884 = vmatpush1.msra.mxu0 0.0
      %885 = vmatprep.subr.mxu0 0.0
      %886 = vmatpush1.msra.mxu0 0.0
      %887 = vmatprep.subr.mxu0 %v851
      %888 = vmatpush1.msra.mxu0 %v850
      %889 = vmatprep.subr.mxu0 %v849
      %890 = vmatpush1.msra.mxu0 %v848
      %891 = vmatprep.subr.mxu0 0.0
      %892 = vmatpush2.msra.mxu0 0.0
      %893 = vmatprep.subr.mxu0 0.0
      %894 = vmatpush2.msra.mxu0 0.0
      %895 = vmatprep.subr.mxu0 0.0
      %896 = vmatpush2.msra.mxu0 0.0
      %897 = vmatprep.subr.mxu0 0.0
      %898 = vmatpush2.msra.mxu0 0.0
      %899 = vmatprep.subr.mxu0 0.0
      %900 = vmatpush2.msra.mxu0 0.0
      %901 = vmatprep.subr.mxu0 0.0
      %902 = vmatpush2.msra.mxu0 0.0
      %903 = vmatprep.subr.mxu0 0.0
      %904 = vmatpush2.msra.mxu0 0.0
      %905 = vmatprep.subr.mxu0 0.0
      %906 = vmatpush2.msra.mxu0 0.0
      %907 = vmatprep.subr.mxu0 0.0
      %908 = vmatpush2.msra.mxu0 0.0
      %909 = vmatprep.subr.mxu0 0.0
      %910 = vmatpush2.msra.mxu0 0.0
      %911 = vmatprep.subr.mxu0 0.0
      %912 = vmatpush2.msra.mxu0 0.0
      %913 = vmatprep.subr.mxu0 0.0
      %914 = vmatpush2.msra.mxu0 0.0
      %915 = vmatprep.subr.mxu0 0.0
      %916 = vmatpush2.msra.mxu0 0.0
      %917 = vmatprep.subr.mxu0 0.0
      %918 = vmatpush2.msra.mxu0 0.0
      %919 = vmatprep.subr.mxu0 0.0
      %920 = vmatpush2.msra.mxu0 0.0
      %921 = vmatprep.subr.mxu0 0.0
      %922 = vmatpush2.msra.mxu0 0.0
      %923 = vmatprep.mubr.f32.mxu0 0.0
      %924 = vmatmul.mubr.f32.gmra.mxu0 %v857
      %v925 = vpop.f32.mrf.mxu0
      %v926 = vadd.f32 0.0, %v925
      %v927 = vpop.f32.mrf.mxu0
      %v928 = vadd.f32 0.0, %v927
      %929 = vdwg.mxu0
      %v930 = vmul.f32 %v926, %v347
      %v931 = vmul.f32 %v928, %v348
      %v932 = vadd.f32 %v831, %v930
      %v933 = vadd.f32 %v832, %v931
      %s934 = scalar_lea.vmem %s4, 24
      %v935 = vld [vmem:[%s934] sm:$0xf]
      %936 = vrot.lane.b32.xlu0 %v306, 96
      %v937 = vpop.permute.xlu0 %936
      %938 = vrot.lane.b32.xlu0 %v298, 96
      %v939 = vpop.permute.xlu0 %938
      %940 = vrot.lane.b32.xlu0 %v308, 96
      %v941 = vpop.permute.xlu0 %940
      %942 = vrot.lane.b32.xlu0 %v307, 96
      %v943 = vpop.permute.xlu0 %942
      %944 = vrot.lane.b32.xlu0 %v299, 96
      %v945 = vpop.permute.xlu0 %944
      %946 = vrot.lane.b32.xlu0 %v309, 96
      %v947 = vpop.permute.xlu0 %946
      %vm948 = vcmask 785408
      %v949 = vsel %vm948, %v937, %v939
      %v950 = vsel %vm948, %v939, %v941
      %v951 = vsel %vm948, %v943, %v945
      %v952 = vsel %vm948, %v945, %v947
      %v958 = vsel %vm350, %v935, 0
      %960 = vmatprep.subr.mxu0 0.0
      %961 = vmatpush1.msra.mxu0 0.0
      %962 = vmatprep.subr.mxu0 0.0
      %963 = vmatpush1.msra.mxu0 0.0
      %964 = vmatprep.subr.mxu0 0.0
      %965 = vmatpush1.msra.mxu0 0.0
      %966 = vmatprep.subr.mxu0 0.0
      %967 = vmatpush1.msra.mxu0 0.0
      %968 = vmatprep.subr.mxu0 0.0
      %969 = vmatpush1.msra.mxu0 0.0
      %970 = vmatprep.subr.mxu0 0.0
      %971 = vmatpush1.msra.mxu0 0.0
      %972 = vmatprep.subr.mxu0 0.0
      %973 = vmatpush1.msra.mxu0 0.0
      %974 = vmatprep.subr.mxu0 0.0
      %975 = vmatpush1.msra.mxu0 0.0
      %976 = vmatprep.subr.mxu0 0.0
      %977 = vmatpush1.msra.mxu0 0.0
      %978 = vmatprep.subr.mxu0 0.0
      %979 = vmatpush1.msra.mxu0 0.0
      %980 = vmatprep.subr.mxu0 0.0
      %981 = vmatpush1.msra.mxu0 0.0
      %982 = vmatprep.subr.mxu0 0.0
      %983 = vmatpush1.msra.mxu0 0.0
      %984 = vmatprep.subr.mxu0 0.0
      %985 = vmatpush1.msra.mxu0 0.0
      %986 = vmatprep.subr.mxu0 0.0
      %987 = vmatpush1.msra.mxu0 0.0
      %988 = vmatprep.subr.mxu0 %v952
      %989 = vmatpush1.msra.mxu0 %v951
      %990 = vmatprep.subr.mxu0 %v950
      %991 = vmatpush1.msra.mxu0 %v949
      %992 = vmatprep.subr.mxu0 0.0
      %993 = vmatpush2.msra.mxu0 0.0
      %994 = vmatprep.subr.mxu0 0.0
      %995 = vmatpush2.msra.mxu0 0.0
      %996 = vmatprep.subr.mxu0 0.0
      %997 = vmatpush2.msra.mxu0 0.0
      %998 = vmatprep.subr.mxu0 0.0
      %999 = vmatpush2.msra.mxu0 0.0
      %1000 = vmatprep.subr.mxu0 0.0
      %1001 = vmatpush2.msra.mxu0 0.0
      %1002 = vmatprep.subr.mxu0 0.0
      %1003 = vmatpush2.msra.mxu0 0.0
      %1004 = vmatprep.subr.mxu0 0.0
      %1005 = vmatpush2.msra.mxu0 0.0
      %1006 = vmatprep.subr.mxu0 0.0
      %1007 = vmatpush2.msra.mxu0 0.0
      %1008 = vmatprep.subr.mxu0 0.0
      %1009 = vmatpush2.msra.mxu0 0.0
      %1010 = vmatprep.subr.mxu0 0.0
      %1011 = vmatpush2.msra.mxu0 0.0
      %1012 = vmatprep.subr.mxu0 0.0
      %1013 = vmatpush2.msra.mxu0 0.0
      %1014 = vmatprep.subr.mxu0 0.0
      %1015 = vmatpush2.msra.mxu0 0.0
      %1016 = vmatprep.subr.mxu0 0.0
      %1017 = vmatpush2.msra.mxu0 0.0
      %1018 = vmatprep.subr.mxu0 0.0
      %1019 = vmatpush2.msra.mxu0 0.0
      %1020 = vmatprep.subr.mxu0 0.0
      %1021 = vmatpush2.msra.mxu0 0.0
      %1022 = vmatprep.subr.mxu0 0.0
      %1023 = vmatpush2.msra.mxu0 0.0
      %1024 = vmatprep.mubr.f32.mxu0 0.0
      %1025 = vmatmul.mubr.f32.gmra.mxu0 %v958
      %v1026 = vpop.f32.mrf.mxu0
      %v1027 = vadd.f32 0.0, %v1026
      %v1028 = vpop.f32.mrf.mxu0
      %v1029 = vadd.f32 0.0, %v1028
      %1030 = vdwg.mxu0
      %v1031 = vmul.f32 %v1027, %v341
      %v1032 = vmul.f32 %v1029, %v342
      %v1033 = vadd.f32 %v932, %v1031
      %v1034 = vadd.f32 %v933, %v1032
      %s1035 = scalar_lea.vmem %s4, 28
      %v1036 = vld [vmem:[%s1035] sm:$0xf]
      %1037 = vrot.lane.b32.xlu0 %v306, 95
      %v1038 = vpop.permute.xlu0 %1037
      %1039 = vrot.lane.b32.xlu0 %v298, 95
      %v1040 = vpop.permute.xlu0 %1039
      %1041 = vrot.lane.b32.xlu0 %v308, 95
      %v1042 = vpop.permute.xlu0 %1041
      %1043 = vrot.lane.b32.xlu0 %v307, 95
      %v1044 = vpop.permute.xlu0 %1043
      %1045 = vrot.lane.b32.xlu0 %v299, 95
      %v1046 = vpop.permute.xlu0 %1045
      %1047 = vrot.lane.b32.xlu0 %v309, 95
      %v1048 = vpop.permute.xlu0 %1047
      %vm1049 = vcmask 777216
      %v1050 = vsel %vm1049, %v1038, %v1040
      %v1051 = vsel %vm1049, %v1040, %v1042
      %v1052 = vsel %vm1049, %v1044, %v1046
      %v1053 = vsel %vm1049, %v1046, %v1048
      %v1059 = vsel %vm350, %v1036, 0
      %1061 = vmatprep.subr.mxu0 0.0
      %1062 = vmatpush1.msra.mxu0 0.0
      %1063 = vmatprep.subr.mxu0 0.0
      %1064 = vmatpush1.msra.mxu0 0.0
      %1065 = vmatprep.subr.mxu0 0.0
      %1066 = vmatpush1.msra.mxu0 0.0
      %1067 = vmatprep.subr.mxu0 0.0
      %1068 = vmatpush1.msra.mxu0 0.0
      %1069 = vmatprep.subr.mxu0 0.0
      %1070 = vmatpush1.msra.mxu0 0.0
      %1071 = vmatprep.subr.mxu0 0.0
      %1072 = vmatpush1.msra.mxu0 0.0
      %1073 = vmatprep.subr.mxu0 0.0
      %1074 = vmatpush1.msra.mxu0 0.0
      %1075 = vmatprep.subr.mxu0 0.0
      %1076 = vmatpush1.msra.mxu0 0.0
      %1077 = vmatprep.subr.mxu0 0.0
      %1078 = vmatpush1.msra.mxu0 0.0
      %1079 = vmatprep.subr.mxu0 0.0
      %1080 = vmatpush1.msra.mxu0 0.0
      %1081 = vmatprep.subr.mxu0 0.0
      %1082 = vmatpush1.msra.mxu0 0.0
      %1083 = vmatprep.subr.mxu0 0.0
      %1084 = vmatpush1.msra.mxu0 0.0
      %1085 = vmatprep.subr.mxu0 0.0
      %1086 = vmatpush1.msra.mxu0 0.0
      %1087 = vmatprep.subr.mxu0 0.0
      %1088 = vmatpush1.msra.mxu0 0.0
      %1089 = vmatprep.subr.mxu0 %v1053
      %1090 = vmatpush1.msra.mxu0 %v1052
      %1091 = vmatprep.subr.mxu0 %v1051
      %1092 = vmatpush1.msra.mxu0 %v1050
      %1093 = vmatprep.subr.mxu0 0.0
      %1094 = vmatpush2.msra.mxu0 0.0
      %1095 = vmatprep.subr.mxu0 0.0
      %1096 = vmatpush2.msra.mxu0 0.0
      %1097 = vmatprep.subr.mxu0 0.0
      %1098 = vmatpush2.msra.mxu0 0.0
      %1099 = vmatprep.subr.mxu0 0.0
      %1100 = vmatpush2.msra.mxu0 0.0
      %1101 = vmatprep.subr.mxu0 0.0
      %1102 = vmatpush2.msra.mxu0 0.0
      %1103 = vmatprep.subr.mxu0 0.0
      %1104 = vmatpush2.msra.mxu0 0.0
      %1105 = vmatprep.subr.mxu0 0.0
      %1106 = vmatpush2.msra.mxu0 0.0
      %1107 = vmatprep.subr.mxu0 0.0
      %1108 = vmatpush2.msra.mxu0 0.0
      %1109 = vmatprep.subr.mxu0 0.0
      %1110 = vmatpush2.msra.mxu0 0.0
      %1111 = vmatprep.subr.mxu0 0.0
      %1112 = vmatpush2.msra.mxu0 0.0
      %1113 = vmatprep.subr.mxu0 0.0
      %1114 = vmatpush2.msra.mxu0 0.0
      %1115 = vmatprep.subr.mxu0 0.0
      %1116 = vmatpush2.msra.mxu0 0.0
      %1117 = vmatprep.subr.mxu0 0.0
      %1118 = vmatpush2.msra.mxu0 0.0
      %1119 = vmatprep.subr.mxu0 0.0
      %1120 = vmatpush2.msra.mxu0 0.0
      %1121 = vmatprep.subr.mxu0 0.0
      %1122 = vmatpush2.msra.mxu0 0.0
      %1123 = vmatprep.subr.mxu0 0.0
      %1124 = vmatpush2.msra.mxu0 0.0
      %1125 = vmatprep.mubr.f32.mxu0 0.0
      %1126 = vmatmul.mubr.f32.gmra.mxu0 %v1059
      %v1127 = vpop.f32.mrf.mxu0
      %v1128 = vadd.f32 0.0, %v1127
      %v1129 = vpop.f32.mrf.mxu0
      %v1130 = vadd.f32 0.0, %v1129
      %1131 = vdwg.mxu0
      %v1132 = vadd.f32 %v1033, %v1128
      %v1133 = vadd.f32 %v1034, %v1130
      %s1134 = scalar_lea.vmem %s4, 32
      %v1135 = vld [vmem:[%s1134] sm:$0xf]
      %1136 = vrot.lane.b32.xlu0 %v306, 94
      %v1137 = vpop.permute.xlu0 %1136
      %1138 = vrot.lane.b32.xlu0 %v298, 94
      %v1139 = vpop.permute.xlu0 %1138
      %1140 = vrot.lane.b32.xlu0 %v308, 94
      %v1141 = vpop.permute.xlu0 %1140
      %1142 = vrot.lane.b32.xlu0 %v307, 94
      %v1143 = vpop.permute.xlu0 %1142
      %1144 = vrot.lane.b32.xlu0 %v299, 94
      %v1145 = vpop.permute.xlu0 %1144
      %1146 = vrot.lane.b32.xlu0 %v309, 94
      %v1147 = vpop.permute.xlu0 %1146
      %vm1148 = vcmask 769024
      %v1149 = vsel %vm1148, %v1137, %v1139
      %v1150 = vsel %vm1148, %v1139, %v1141
      %v1151 = vsel %vm1148, %v1143, %v1145
      %v1152 = vsel %vm1148, %v1145, %v1147
      %v1158 = vsel %vm350, %v1135, 0
      %1160 = vmatprep.subr.mxu0 0.0
      %1161 = vmatpush1.msra.mxu0 0.0
      %1162 = vmatprep.subr.mxu0 0.0
      %1163 = vmatpush1.msra.mxu0 0.0
      %1164 = vmatprep.subr.mxu0 0.0
      %1165 = vmatpush1.msra.mxu0 0.0
      %1166 = vmatprep.subr.mxu0 0.0
      %1167 = vmatpush1.msra.mxu0 0.0
      %1168 = vmatprep.subr.mxu0 0.0
      %1169 = vmatpush1.msra.mxu0 0.0
      %1170 = vmatprep.subr.mxu0 0.0
      %1171 = vmatpush1.msra.mxu0 0.0
      %1172 = vmatprep.subr.mxu0 0.0
      %1173 = vmatpush1.msra.mxu0 0.0
      %1174 = vmatprep.subr.mxu0 0.0
      %1175 = vmatpush1.msra.mxu0 0.0
      %1176 = vmatprep.subr.mxu0 0.0
      %1177 = vmatpush1.msra.mxu0 0.0
      %1178 = vmatprep.subr.mxu0 0.0
      %1179 = vmatpush1.msra.mxu0 0.0
      %1180 = vmatprep.subr.mxu0 0.0
      %1181 = vmatpush1.msra.mxu0 0.0
      %1182 = vmatprep.subr.mxu0 0.0
      %1183 = vmatpush1.msra.mxu0 0.0
      %1184 = vmatprep.subr.mxu0 0.0
      %1185 = vmatpush1.msra.mxu0 0.0
      %1186 = vmatprep.subr.mxu0 0.0
      %1187 = vmatpush1.msra.mxu0 0.0
      %1188 = vmatprep.subr.mxu0 %v1152
      %1189 = vmatpush1.msra.mxu0 %v1151
      %1190 = vmatprep.subr.mxu0 %v1150
      %1191 = vmatpush1.msra.mxu0 %v1149
      %1192 = vmatprep.subr.mxu0 0.0
      %1193 = vmatpush2.msra.mxu0 0.0
      %1194 = vmatprep.subr.mxu0 0.0
      %1195 = vmatpush2.msra.mxu0 0.0
      %1196 = vmatprep.subr.mxu0 0.0
      %1197 = vmatpush2.msra.mxu0 0.0
      %1198 = vmatprep.subr.mxu0 0.0
      %1199 = vmatpush2.msra.mxu0 0.0
      %1200 = vmatprep.subr.mxu0 0.0
      %1201 = vmatpush2.msra.mxu0 0.0
      %1202 = vmatprep.subr.mxu0 0.0
      %1203 = vmatpush2.msra.mxu0 0.0
      %1204 = vmatprep.subr.mxu0 0.0
      %1205 = vmatpush2.msra.mxu0 0.0
      %1206 = vmatprep.subr.mxu0 0.0
      %1207 = vmatpush2.msra.mxu0 0.0
      %1208 = vmatprep.subr.mxu0 0.0
      %1209 = vmatpush2.msra.mxu0 0.0
      %1210 = vmatprep.subr.mxu0 0.0
      %1211 = vmatpush2.msra.mxu0 0.0
      %1212 = vmatprep.subr.mxu0 0.0
      %1213 = vmatpush2.msra.mxu0 0.0
      %1214 = vmatprep.subr.mxu0 0.0
      %1215 = vmatpush2.msra.mxu0 0.0
      %1216 = vmatprep.subr.mxu0 0.0
      %1217 = vmatpush2.msra.mxu0 0.0
      %1218 = vmatprep.subr.mxu0 0.0
      %1219 = vmatpush2.msra.mxu0 0.0
      %1220 = vmatprep.subr.mxu0 0.0
      %1221 = vmatpush2.msra.mxu0 0.0
      %1222 = vmatprep.subr.mxu0 0.0
      %1223 = vmatpush2.msra.mxu0 0.0
      %1224 = vmatprep.mubr.f32.mxu0 0.0
      %1225 = vmatmul.mubr.f32.gmra.mxu0 %v1158
      %v1226 = vpop.f32.mrf.mxu0
      %v1227 = vadd.f32 0.0, %v1226
      %v1228 = vpop.f32.mrf.mxu0
      %v1229 = vadd.f32 0.0, %v1228
      %1230 = vdwg.mxu0
      %v1231 = vmul.f32 %v1227, %v347
      %v1232 = vmul.f32 %v1229, %v348
      %v1233 = vadd.f32 %v1132, %v1231
      %v1234 = vadd.f32 %v1133, %v1232
      %v1235 = vld [vmem:[%s234] sm:$0xff]
      %v1237 = vcombine.high %v1235, %v1235
      %v1241 = vrot.slane %v1233, 4
      %v1242 = vrot.slane %v1234, 4
      %vm1245 = vcmask 1043456
      %v1246 = vsel %vm1245, %v1235, %v1241
      %v1247 = vsel %vm1245, %v1237, %v1242
      %1248 = vst [vmem:[%s244] sm:$0xff] %v1246
      %1249 = vst [vmem:[%s244 + $0x8] sm:$0xff] %v1247
      %p1250 = scmp.lt.s32.totalorder %s16, 1
      %s1251 = scalar_select %p1250, %s16, 1
      %s1252 = smul.addr %s1251, 2
      %s1253 = smul.addr %s1252, 8
      %s1254 = scalar_lea.vmem %s5, %s1253
      // Predicated region
      $region41: #{bottleneck_forward.3} parent=39 // pred_check
        %p1255 = pneg %p149
      $region42: #{bottleneck_forward.3} parent=39 // pred_check_branch
        %1257 = sbr.rel (%p1255) target = $region44
      $region43: #{bottleneck_forward.3} parent=39 // pred_region
        _
      $region44: #{bottleneck_forward.3} parent=39 // pred_fallthru
        _
    $region40: #{bottleneck_forward.3} parent=5 // pred_fallthru
      _
    %p1258 = scmp.le.s32.totalorder 2, %s11
    // Predicated region
    $region45: #{bottleneck_forward.3} parent=5 // pred_check
      %p1259 = pneg %p1258
    $region46: #{bottleneck_forward.3} parent=5 // pred_check_branch
      %1261 = sbr.rel (%p1259) target = $region48
    $region47: #{bottleneck_forward.3} parent=5 // pred_region
      %s1262 = ssub.s32 %s11, 2
      // Predicated region
      $region49: #{bottleneck_forward.3} parent=47 // pred_check
        %p1263 = pneg %p155
      $region50: #{bottleneck_forward.3} parent=47 // pred_check_branch
        %1265 = sbr.rel (%p1263) target = $region52
      $region51: #{bottleneck_forward.3} parent=47 // pred_region
        %p1266 = scmp.lt.s32.totalorder %s17, 1
        %s1267 = scalar_select %p1266, %s17, 1
        %s1268 = smul.addr %s1267, 2
        %s1269 = smul.addr %s1268, 8
        %s1270 = scalar_lea.vmem %s5, %s1269
      $region52: #{bottleneck_forward.3} parent=47 // pred_fallthru
        _
    $region48: #{bottleneck_forward.3} parent=5 // pred_fallthru
      _
  $region6: #{bottleneck_forward.3} parent=0 // loop_footer
    %s15 = sadd.s32 1, %s11
  $region7: #{bottleneck_forward.3} parent=0 // loop_footer_branch
    %10 = sbr.rel target = $region3
  $region8: #{bottleneck_forward.3} parent=0 // loop_exit
    _

</llo_original>
